<compile_context>
chip_gen: v5e
topology: v5e:2x2
jax: 0.10.0
libtpu: 0.0.40
codegen_flags: <defaults>
</compile_context>

<pallas_src>
import functools

import jax
import jax.numpy as jnp
from jax import lax
from jax.experimental import pallas as pl
from jax.experimental.pallas import tpu as pltpu


_OUT_LANES = 128   # packed output width: [logits | emd | zero pad]


def _encode(x, wb, cin, cf, use_vpu):
    """relu(W @ x + b) with W|b packed as wb = [Cf, Cin+1] (bias = last column).

    x: [Cin, N] channel-major (N = TB*HW, lane-dense). Returns [Cf, N] f32.
    For tiny Cin the MXU shape (K=Cin) is degenerate, so a short unrolled
    broadcast-FMA chain on the (otherwise idle) VPU is used instead.
    """
    if use_vpu:
        acc = wb[:, cin:cin + 1] + wb[:, 0:1] * x[0:1, :]
        for c in range(1, cin):                     # static unroll, Cin is tiny
            acc = acc + wb[:, c:c + 1] * x[c:c + 1, :]
    else:
        acc = jnp.dot(wb[:, :cin], x, preferred_element_type=jnp.float32)
        acc = acc + wb[:, cin:cin + 1]
    return jnp.maximum(acc, 0.0)


def _deepemd_kernel(*refs, tb, hw, cin, cf, nc, temperature, training,
                    use_vpu_encoder):
    if training:
        x1_ref, x2_ref, enc_wb_ref, cls_wb_ref, out_ref = refs
    else:
        x1_ref, enc_wb_ref, cls_wb_ref, out_ref = refs

    enc_wb = enc_wb_ref[...]                                         # [Cf, Cin+1]
    feat1 = _encode(x1_ref[...], enc_wb, cin, cf, use_vpu_encoder)   # [Cf, TB*HW]

    # classifier = AdaptiveAvgPool2d(1,1) + Flatten + Linear, per item.
    # HW is a multiple of 128 so the [Cf, TB, HW] reshape is lane-aligned.
    gap = jnp.mean(feat1.reshape(cf, tb, hw), axis=2)                # [Cf, TB]
    logits = lax.dot_general(gap, cls_wb_ref[:cf, :],
                             (((0,), (0,)), ((), ())),
                             preferred_element_type=jnp.float32)     # [TB, nc]
    logits = logits + cls_wb_ref[cf:cf + 1, :]

    # One lane-dense [TB, 128] output block (writeback DMA is a single dense
    # stream); the tiny in-VMEM partial stores below are negligible.
    out_ref[...] = jnp.zeros((tb, _OUT_LANES), jnp.float32)
    out_ref[:, :nc] = logits

    if training:
        feat2 = _encode(x2_ref[...], enc_wb, cin, cf, use_vpu_encoder)

        # emd_forward(proto=feat2(aug), query=feat1(img)):
        #   normalize_feature(norm='center') then cosine similarity ('cosine').
        # TODO(synk): the optimal-transport flow (emd_inference_opencv/qpth fed
        # by get_weight_vector) has no Pallas equivalent; with the flow
        # re-weighting omitted, sum_{q,p} cos(q,p) == dot(sum_q q_hat,
        # sum_p p_hat), so the [HW, HW] similarity map is never materialized.
        def center_norm(f):
            c = f - jnp.mean(f, axis=0, keepdims=True)          # center over channels
            inv = lax.rsqrt(jnp.sum(c * c, axis=0, keepdims=True) + 1e-16)
            return c * inv                                      # EUP rsqrt, no divide

        q_hat = center_norm(feat1)                              # [Cf, TB*HW]
        p_hat = center_norm(feat2)
        q_sum = jnp.sum(q_hat.reshape(cf, tb, hw), axis=2)      # [Cf, TB]
        p_sum = jnp.sum(p_hat.reshape(cf, tb, hw), axis=2)      # [Cf, TB]
        ones_col = jnp.ones((cf, 1), jnp.float32)
        emd = lax.dot_general(q_sum * p_sum, ones_col,
                              (((0,), (0,)), ((), ())),
                              preferred_element_type=jnp.float32)   # [TB, 1]
        out_ref[:, nc:nc + 1] = emd * (temperature / hw)


def _pick_batch_block(B, Cin, Cf, HW, training, vmem_budget=16 << 20):
    """Items per grid step: big enough to amortize the ~0.35us/step overhead,
    small enough that double-buffered inputs + f32 feature temporaries stay
    well inside v7x's smaller scoped VMEM, tile-legal (multiple of 8 or the
    whole batch; TB*HW lane-aligned), and >=2 steps for large B (v7x megacore).
    """
    n_in = 2 if training else 1
    per_item_bytes = (2 * n_in * Cin + 2 * n_in * Cf) * HW * 4
    cap = max(1, vmem_budget // per_item_bytes)
    best = None
    for tb in range(1, B + 1):
        if B % tb:
            continue
        if tb != B and tb % 8:                 # out-block sublane legality
            continue
        if tb != B and (tb * HW) % 128:        # in-block lane legality
            continue
        if tb > cap or tb > 128:
            continue
        if B > 8 and B // tb < 2 and best is not None:
            continue                           # keep >=2 grid steps for v7x
        best = tb
    return best if best is not None else B


def deep_emd_forward(params, batch, training=True, temperature=12.5):
    """DeepEMD.forward (training branch; args: norm='center', metric='cosine',
    downsample=False, feature_pyramid=None, target_layers=[0])."""
    img, target = batch[0], batch[1]
    B, Cin, H, W = img.shape
    HW = H * W
    enc_w, enc_b = params['enc_w'], params['enc_b']     # [Cf, Cin], [Cf]
    cls_w, cls_b = params['cls_w'], params['cls_b']     # [Cf, nc], [nc]
    Cf, nc = cls_w.shape
    assert nc + 1 <= _OUT_LANES

    # fold biases into the weight blocks (no sub-(8,128) 1-lane param blocks)
    enc_wb = jnp.concatenate([enc_w, enc_b.reshape(Cf, 1)], axis=1)   # [Cf, Cin+1]
    cls_wb = jnp.concatenate([cls_w, cls_b.reshape(1, nc)], axis=0)   # [Cf+1, nc]

    TB = _pick_batch_block(B, Cin, Cf, HW, training)
    grid = (B // TB,)

    # channel-major layout: [B, Cin, H, W] -> [Cin, B*HW] (tiny HBM transpose)
    # so each grid step does one lane-dense (N = TB*HW) encoder pass.
    def to_cm(x):
        return jnp.transpose(x.reshape(B, Cin, HW), (1, 0, 2)).reshape(Cin, B * HW)

    inputs = [to_cm(img)]
    in_specs = [pl.BlockSpec((Cin, TB * HW), lambda i: (0, i))]
    if training:
        inputs.append(to_cm(batch[2]))
        in_specs.append(pl.BlockSpec((Cin, TB * HW), lambda i: (0, i)))
    inputs += [enc_wb, cls_wb]
    in_specs += [pl.BlockSpec((Cf, Cin + 1), lambda i: (0, 0)),
                 pl.BlockSpec((Cf + 1, nc), lambda i: (0, 0))]

    kernel = functools.partial(
        _deepemd_kernel, tb=TB, hw=HW, cin=Cin, cf=Cf, nc=nc,
        temperature=float(temperature), training=training,
        use_vpu_encoder=(Cin <= 8))

    packed = pl.pallas_call(
        kernel,
        out_shape=jax.ShapeDtypeStruct((B, _OUT_LANES), jnp.float32),
        grid=grid,
        in_specs=in_specs,
        out_specs=pl.BlockSpec((TB, _OUT_LANES), lambda i: (i, 0)),
        compiler_params=pltpu.CompilerParams(
            dimension_semantics=("parallel",)),      # v7x: split steps over 2 TCs
    )(*inputs)

    logits1 = packed[:, :nc]                              # [B, nc]
    emd_logits = [packed[:, nc]] if training else []      # args.target_layers == [0]
    return logits1, emd_logits, target


if __name__ == "__main__":
    key = jax.random.PRNGKey(0)
    B, Cin, H, W = 2, 4, 16, 16                 # HW = 256 (lane-aligned)
    Cf, num_classes = 32, 8

    k1, k2, k3, k4 = jax.random.split(key, 4)
    img = jax.random.normal(k1, (B, Cin, H, W), jnp.float32)
    img_aug = jax.random.normal(k2, (B, Cin, H, W), jnp.float32)
    target = jnp.arange(B, dtype=jnp.int32) % num_classes

    params = {
        # encoder-stub 1x1-conv weight, stored pre-transposed as [Cf, Cin]
        'enc_w': 0.1 * jax.random.normal(k3, (Cf, Cin), jnp.float32),
        'enc_b': jnp.zeros((Cf,), jnp.float32),
        'cls_w': 0.1 * jax.random.normal(k4, (Cf, num_classes), jnp.float32),
        'cls_b': jnp.zeros((num_classes,), jnp.float32),
    }

    logits1, emd_logits, tgt = deep_emd_forward(
        params, (img, target, img_aug), training=True, temperature=12.5)

    jax.block_until_ready(logits1)
    for l in emd_logits:
        jax.block_until_ready(l)
    jax.block_until_ready(tgt)
    print("KERNEL_OK")
</pallas_src>

<mosaic_0001>
module attributes {stable_mosaic.version = 11 : i64} {
  func.func @_deepemd_kernel(%arg0: i32, %arg1: memref<4x512xf32, #tpu.memory_space<vmem>>, %arg2: memref<4x512xf32, #tpu.memory_space<vmem>>, %arg3: memref<32x5xf32, #tpu.memory_space<vmem>>, %arg4: memref<33x8xf32, #tpu.memory_space<vmem>>, %arg5: memref<2x128xf32, #tpu.memory_space<vmem>>) attributes {dimension_semantics = [#tpu.dimension_semantics<parallel>], iteration_bounds = array<i64: 1>, scalar_prefetch = 0 : i64, scratch_operands = 0 : i64, tpu.core_type = #tpu.core_type<tc>, window_params = [{transform_indices = @transform_0, window_bounds = array<i64: 4, 512>}, {transform_indices = @transform_1, window_bounds = array<i64: 4, 512>}, {pipeline_mode = #tpu.pipeline_mode<synchronous>, transform_indices = @transform_2, window_bounds = array<i64: 32, 5>}, {pipeline_mode = #tpu.pipeline_mode<synchronous>, transform_indices = @transform_3, window_bounds = array<i64: 33, 8>}, {transform_indices = @transform_4, window_bounds = array<i64: 2, 128>}]} {
    %c0 = arith.constant 0 : index
    %c0_0 = arith.constant 0 : index
    %0 = vector.load %arg3[%c0, %c0_0] : memref<32x5xf32, #tpu.memory_space<vmem>>, vector<32x5xf32>
    %c0_1 = arith.constant 0 : index
    %c0_2 = arith.constant 0 : index
    %1 = vector.load %arg1[%c0_1, %c0_2] : memref<4x512xf32, #tpu.memory_space<vmem>>, vector<4x512xf32>
    %2 = vector.extract_strided_slice %0 {offsets = [0, 4], sizes = [32, 1], strides = [1, 1]} : vector<32x5xf32> to vector<32x1xf32>
    %3 = vector.extract_strided_slice %0 {offsets = [0, 0], sizes = [32, 1], strides = [1, 1]} : vector<32x5xf32> to vector<32x1xf32>
    %4 = vector.extract_strided_slice %1 {offsets = [0, 0], sizes = [1, 512], strides = [1, 1]} : vector<4x512xf32> to vector<1x512xf32>
    %5 = vector.broadcast %3 : vector<32x1xf32> to vector<32x512xf32>
    %6 = vector.broadcast %4 : vector<1x512xf32> to vector<32x512xf32>
    %7 = arith.mulf %5, %6 : vector<32x512xf32>
    %8 = vector.broadcast %2 : vector<32x1xf32> to vector<32x512xf32>
    %9 = arith.addf %8, %7 : vector<32x512xf32>
    %10 = vector.extract_strided_slice %0 {offsets = [0, 1], sizes = [32, 1], strides = [1, 1]} : vector<32x5xf32> to vector<32x1xf32>
    %11 = vector.extract_strided_slice %1 {offsets = [1, 0], sizes = [1, 512], strides = [1, 1]} : vector<4x512xf32> to vector<1x512xf32>
    %12 = vector.broadcast %10 : vector<32x1xf32> to vector<32x512xf32>
    %13 = vector.broadcast %11 : vector<1x512xf32> to vector<32x512xf32>
    %14 = arith.mulf %12, %13 : vector<32x512xf32>
    %15 = arith.addf %9, %14 : vector<32x512xf32>
    %16 = vector.extract_strided_slice %0 {offsets = [0, 2], sizes = [32, 1], strides = [1, 1]} : vector<32x5xf32> to vector<32x1xf32>
    %17 = vector.extract_strided_slice %1 {offsets = [2, 0], sizes = [1, 512], strides = [1, 1]} : vector<4x512xf32> to vector<1x512xf32>
    %18 = vector.broadcast %16 : vector<32x1xf32> to vector<32x512xf32>
    %19 = vector.broadcast %17 : vector<1x512xf32> to vector<32x512xf32>
    %20 = arith.mulf %18, %19 : vector<32x512xf32>
    %21 = arith.addf %15, %20 : vector<32x512xf32>
    %22 = vector.extract_strided_slice %0 {offsets = [0, 3], sizes = [32, 1], strides = [1, 1]} : vector<32x5xf32> to vector<32x1xf32>
    %23 = vector.extract_strided_slice %1 {offsets = [3, 0], sizes = [1, 512], strides = [1, 1]} : vector<4x512xf32> to vector<1x512xf32>
    %24 = vector.broadcast %22 : vector<32x1xf32> to vector<32x512xf32>
    %25 = vector.broadcast %23 : vector<1x512xf32> to vector<32x512xf32>
    %26 = arith.mulf %24, %25 : vector<32x512xf32>
    %27 = arith.addf %21, %26 : vector<32x512xf32>
    %cst = arith.constant 0.000000e+00 : f32
    %28 = vector.broadcast %cst : f32 to vector<32x512xf32>
    %29 = arith.maximumf %27, %28 : vector<32x512xf32>
    %30 = vector.shape_cast %29 : vector<32x512xf32> to vector<32x2x256xf32>
    %cst_3 = arith.constant dense<0.000000e+00> : vector<32x2xf32>
    %31 = vector.multi_reduction <add>, %30, %cst_3 [2] : vector<32x2x256xf32> to vector<32x2xf32>
    %cst_4 = arith.constant 2.560000e+02 : f32
    %32 = vector.broadcast %cst_4 : f32 to vector<32x2xf32>
    %33 = arith.divf %31, %32 : vector<32x2xf32>
    %c0_5 = arith.constant 0 : index
    %c0_6 = arith.constant 0 : index
    %34 = vector.load %arg4[%c0_5, %c0_6] : memref<33x8xf32, #tpu.memory_space<vmem>>, vector<32x8xf32>
    %cst_7 = arith.constant dense<0.000000e+00> : vector<2x8xf32>
    %35 = tpu.matmul %33, %34, %cst_7 {dimension_numbers = #tpu.dot_dimension_numbers<[0], [0], [1], [1], [0, 1, 1, 1], [], []>} : vector<32x2xf32>, vector<32x8xf32>, vector<2x8xf32> -> vector<2x8xf32>
    %c32 = arith.constant 32 : index
    %c0_8 = arith.constant 0 : index
    %36 = vector.load %arg4[%c32, %c0_8] : memref<33x8xf32, #tpu.memory_space<vmem>>, vector<1x8xf32>
    %37 = vector.broadcast %36 : vector<1x8xf32> to vector<2x8xf32>
    %38 = arith.addf %35, %37 : vector<2x8xf32>
    %cst_9 = arith.constant 0.000000e+00 : f32
    %39 = vector.broadcast %cst_9 : f32 to vector<2x128xf32>
    %c0_10 = arith.constant 0 : index
    %c0_11 = arith.constant 0 : index
    %40 = vector.load %arg5[%c0_10, %c0_11] : memref<2x128xf32, #tpu.memory_space<vmem>>, vector<2x128xf32>
    tpu.vector_store %arg5[%c0_10, %c0_11], %39 {strides = array<i32>} : memref<2x128xf32, #tpu.memory_space<vmem>>, vector<2x128xf32>,
    %c0_12 = arith.constant 0 : index
    %c0_13 = arith.constant 0 : index
    %41 = vector.load %arg5[%c0_12, %c0_13] : memref<2x128xf32, #tpu.memory_space<vmem>>, vector<2x8xf32>
    tpu.vector_store %arg5[%c0_12, %c0_13], %38 {strides = array<i32>} : memref<2x128xf32, #tpu.memory_space<vmem>>, vector<2x8xf32>,
    %c0_14 = arith.constant 0 : index
    %c0_15 = arith.constant 0 : index
    %42 = vector.load %arg2[%c0_14, %c0_15] : memref<4x512xf32, #tpu.memory_space<vmem>>, vector<4x512xf32>
    %43 = vector.extract_strided_slice %0 {offsets = [0, 4], sizes = [32, 1], strides = [1, 1]} : vector<32x5xf32> to vector<32x1xf32>
    %44 = vector.extract_strided_slice %0 {offsets = [0, 0], sizes = [32, 1], strides = [1, 1]} : vector<32x5xf32> to vector<32x1xf32>
    %45 = vector.extract_strided_slice %42 {offsets = [0, 0], sizes = [1, 512], strides = [1, 1]} : vector<4x512xf32> to vector<1x512xf32>
    %46 = vector.broadcast %44 : vector<32x1xf32> to vector<32x512xf32>
    %47 = vector.broadcast %45 : vector<1x512xf32> to vector<32x512xf32>
    %48 = arith.mulf %46, %47 : vector<32x512xf32>
    %49 = vector.broadcast %43 : vector<32x1xf32> to vector<32x512xf32>
    %50 = arith.addf %49, %48 : vector<32x512xf32>
    %51 = vector.extract_strided_slice %0 {offsets = [0, 1], sizes = [32, 1], strides = [1, 1]} : vector<32x5xf32> to vector<32x1xf32>
    %52 = vector.extract_strided_slice %42 {offsets = [1, 0], sizes = [1, 512], strides = [1, 1]} : vector<4x512xf32> to vector<1x512xf32>
    %53 = vector.broadcast %51 : vector<32x1xf32> to vector<32x512xf32>
    %54 = vector.broadcast %52 : vector<1x512xf32> to vector<32x512xf32>
    %55 = arith.mulf %53, %54 : vector<32x512xf32>
    %56 = arith.addf %50, %55 : vector<32x512xf32>
    %57 = vector.extract_strided_slice %0 {offsets = [0, 2], sizes = [32, 1], strides = [1, 1]} : vector<32x5xf32> to vector<32x1xf32>
    %58 = vector.extract_strided_slice %42 {offsets = [2, 0], sizes = [1, 512], strides = [1, 1]} : vector<4x512xf32> to vector<1x512xf32>
    %59 = vector.broadcast %57 : vector<32x1xf32> to vector<32x512xf32>
    %60 = vector.broadcast %58 : vector<1x512xf32> to vector<32x512xf32>
    %61 = arith.mulf %59, %60 : vector<32x512xf32>
    %62 = arith.addf %56, %61 : vector<32x512xf32>
    %63 = vector.extract_strided_slice %0 {offsets = [0, 3], sizes = [32, 1], strides = [1, 1]} : vector<32x5xf32> to vector<32x1xf32>
    %64 = vector.extract_strided_slice %42 {offsets = [3, 0], sizes = [1, 512], strides = [1, 1]} : vector<4x512xf32> to vector<1x512xf32>
    %65 = vector.broadcast %63 : vector<32x1xf32> to vector<32x512xf32>
    %66 = vector.broadcast %64 : vector<1x512xf32> to vector<32x512xf32>
    %67 = arith.mulf %65, %66 : vector<32x512xf32>
    %68 = arith.addf %62, %67 : vector<32x512xf32>
    %cst_16 = arith.constant 0.000000e+00 : f32
    %69 = vector.broadcast %cst_16 : f32 to vector<32x512xf32>
    %70 = arith.maximumf %68, %69 : vector<32x512xf32>
    %cst_17 = arith.constant dense<0.000000e+00> : vector<512xf32>
    %71 = vector.multi_reduction <add>, %29, %cst_17 [0] : vector<32x512xf32> to vector<512xf32>
    %72 = vector.shape_cast %71 : vector<512xf32> to vector<1x512xf32>
    %cst_18 = arith.constant 3.200000e+01 : f32
    %73 = vector.broadcast %cst_18 : f32 to vector<1x512xf32>
    %74 = arith.divf %72, %73 : vector<1x512xf32>
    %75 = vector.broadcast %74 : vector<1x512xf32> to vector<32x512xf32>
    %76 = arith.subf %29, %75 : vector<32x512xf32>
    %77 = arith.mulf %76, %76 : vector<32x512xf32>
    %cst_19 = arith.constant dense<0.000000e+00> : vector<512xf32>
    %78 = vector.multi_reduction <add>, %77, %cst_19 [0] : vector<32x512xf32> to vector<512xf32>
    %79 = vector.shape_cast %78 : vector<512xf32> to vector<1x512xf32>
    %cst_20 = arith.constant 1.000000e-16 : f32
    %80 = vector.broadcast %cst_20 : f32 to vector<1x512xf32>
    %81 = arith.addf %79, %80 : vector<1x512xf32>
    %82 = math.rsqrt %81 : vector<1x512xf32>
    %83 = vector.broadcast %82 : vector<1x512xf32> to vector<32x512xf32>
    %84 = arith.mulf %76, %83 : vector<32x512xf32>
    %cst_21 = arith.constant dense<0.000000e+00> : vector<512xf32>
    %85 = vector.multi_reduction <add>, %70, %cst_21 [0] : vector<32x512xf32> to vector<512xf32>
    %86 = vector.shape_cast %85 : vector<512xf32> to vector<1x512xf32>
    %cst_22 = arith.constant 3.200000e+01 : f32
    %87 = vector.broadcast %cst_22 : f32 to vector<1x512xf32>
    %88 = arith.divf %86, %87 : vector<1x512xf32>
    %89 = vector.broadcast %88 : vector<1x512xf32> to vector<32x512xf32>
    %90 = arith.subf %70, %89 : vector<32x512xf32>
    %91 = arith.mulf %90, %90 : vector<32x512xf32>
    %cst_23 = arith.constant dense<0.000000e+00> : vector<512xf32>
    %92 = vector.multi_reduction <add>, %91, %cst_23 [0] : vector<32x512xf32> to vector<512xf32>
    %93 = vector.shape_cast %92 : vector<512xf32> to vector<1x512xf32>
    %cst_24 = arith.constant 1.000000e-16 : f32
    %94 = vector.broadcast %cst_24 : f32 to vector<1x512xf32>
    %95 = arith.addf %93, %94 : vector<1x512xf32>
    %96 = math.rsqrt %95 : vector<1x512xf32>
    %97 = vector.broadcast %96 : vector<1x512xf32> to vector<32x512xf32>
    %98 = arith.mulf %90, %97 : vector<32x512xf32>
    %99 = vector.shape_cast %84 : vector<32x512xf32> to vector<32x2x256xf32>
    %cst_25 = arith.constant dense<0.000000e+00> : vector<32x2xf32>
    %100 = vector.multi_reduction <add>, %99, %cst_25 [2] : vector<32x2x256xf32> to vector<32x2xf32>
    %101 = vector.shape_cast %98 : vector<32x512xf32> to vector<32x2x256xf32>
    %cst_26 = arith.constant dense<0.000000e+00> : vector<32x2xf32>
    %102 = vector.multi_reduction <add>, %101, %cst_26 [2] : vector<32x2x256xf32> to vector<32x2xf32>
    %cst_27 = arith.constant 1.000000e+00 : f32
    %103 = vector.broadcast %cst_27 : f32 to vector<32x1xf32>
    %104 = arith.mulf %100, %102 : vector<32x2xf32>
    %cst_28 = arith.constant dense<0.000000e+00> : vector<2x1xf32>
    %105 = tpu.matmul %104, %103, %cst_28 {dimension_numbers = #tpu.dot_dimension_numbers<[0], [0], [1], [1], [0, 1, 1, 1], [], []>} : vector<32x2xf32>, vector<32x1xf32>, vector<2x1xf32> -> vector<2x1xf32>
    %cst_29 = arith.constant 0.048828125 : f32
    %106 = vector.broadcast %cst_29 : f32 to vector<2x1xf32>
    %107 = arith.mulf %105, %106 : vector<2x1xf32>
    %c0_30 = arith.constant 0 : index
    %c8 = arith.constant 8 : index
    %108 = vector.load %arg5[%c0_30, %c8] : memref<2x128xf32, #tpu.memory_space<vmem>>, vector<2x1xf32>
    tpu.vector_store %arg5[%c0_30, %c8], %107 {strides = array<i32>} : memref<2x128xf32, #tpu.memory_space<vmem>>, vector<2x1xf32>,
    return
  }
  func.func @transform_0(%arg0: i32) -> (i32, i32) {
    %c0_i32 = arith.constant 0 : i32
    %c0_i32_0 = arith.constant 0 : i32
    return %c0_i32, %arg0 : i32, i32
  }
  func.func @transform_1(%arg0: i32) -> (i32, i32) {
    %c0_i32 = arith.constant 0 : i32
    %c0_i32_0 = arith.constant 0 : i32
    return %c0_i32, %arg0 : i32, i32
  }
  func.func @transform_2(%arg0: i32) -> (i32, i32) {
    %c0_i32 = arith.constant 0 : i32
    %c0_i32_0 = arith.constant 0 : i32
    %c0_i32_1 = arith.constant 0 : i32
    return %c0_i32, %c0_i32_0 : i32, i32
  }
  func.func @transform_3(%arg0: i32) -> (i32, i32) {
    %c0_i32 = arith.constant 0 : i32
    %c0_i32_0 = arith.constant 0 : i32
    %c0_i32_1 = arith.constant 0 : i32
    return %c0_i32, %c0_i32_0 : i32, i32
  }
  func.func @transform_4(%arg0: i32) -> (i32, i32) {
    %c0_i32 = arith.constant 0 : i32
    %c0_i32_0 = arith.constant 0 : i32
    return %arg0, %c0_i32 : i32, i32
  }
}

</mosaic_0001>

<llo_original>
// kernel: tpu_custom_call.1
$region0: #{tpu_custom_call.1}
  #allocation0 [shape = 'u32[]', space=smem, size = 0x4, offset = 0x4, fixed_abs, tag = 'smem constant byte address 0x4 - core index']
  #allocation1 [shape = 'u32[72,128]{1,0:T(1,128)}', space=vmem, size = 0x9000, scoped, tag = 'internal scratch']
  %s0 = inlined_call_operand.vmem [shape: f32[4,512], index: 0, kind: input, shape index: {}]
  %s1 = inlined_call_operand.vmem [shape: f32[4,512], index: 1, kind: input, shape index: {}]
  %s2 = inlined_call_operand.vmem [shape: f32[32,5], index: 2, kind: input, shape index: {}]
  %s3 = inlined_call_operand.vmem [shape: f32[33,8], index: 3, kind: input, shape index: {}]
  %s4 = inlined_call_operand.hbm [shape: f32[2,128], index: 4, kind: output, shape index: {}]
  %s5 = sld [smem:[#allocation0]]
  $region26: #{tpu_custom_call.1} parent=0
    _
  %s7 = ssub.s32 1, %s5
  %s8 = scalar_select 0, %s7, %s5
  $region1: #{tpu_custom_call.1} parent=0
    #allocation2 [shape = 'u8[1024]{0}', space=vmem, size = 0x400, scoped, tag = 'output window, operand 0, single buffered']
    #allocation3 [shape = 's32[1]{0}', space=sflag, size = 0x4, scoped, tag = 'scoped memory for tpu_custom_call.1']
    %9 = vsyncpa [#allocation3], 0
    // Predicated region
    $region2: #{tpu_custom_call.1} parent=1 // pred_check
      _
    $region3: #{tpu_custom_call.1} parent=1 // pred_check_branch
      %11 = sbr.rel (0) target = $region5
    $region4: #{tpu_custom_call.1} parent=1 // pred_region
      _
    $region5: #{tpu_custom_call.1} parent=1 // pred_fallthru
      _
    // Predicated region
    $region6: #{tpu_custom_call.1} parent=1 // pred_check
      _
    $region7: #{tpu_custom_call.1} parent=1 // pred_check_branch
      %13 = sbr.rel (0) target = $region9
    $region8: #{tpu_custom_call.1} parent=1 // pred_region
      _
    $region9: #{tpu_custom_call.1} parent=1 // pred_fallthru
      _
    // Predicated region
    $region10: #{tpu_custom_call.1} parent=1 // pred_check
      _
    $region11: #{tpu_custom_call.1} parent=1 // pred_check_branch
      %15 = sbr.rel (0) target = $region13
    $region12: #{tpu_custom_call.1} parent=1 // pred_region
      _
    $region13: #{tpu_custom_call.1} parent=1 // pred_fallthru
      _
    // Predicated region
    $region14: #{tpu_custom_call.1} parent=1 // pred_check
      _
    $region15: #{tpu_custom_call.1} parent=1 // pred_check_branch
      %17 = sbr.rel (0) target = $region17
    $region16: #{tpu_custom_call.1} parent=1 // pred_region
      _
    $region17: #{tpu_custom_call.1} parent=1 // pred_fallthru
      _
    %v18 = vld [vmem:[%s2] sm:$0xff]
    %v19 = vld [vmem:[%s2 + $0x8] sm:$0xff]
    %v20 = vld [vmem:[%s2 + $0x10] sm:$0xff]
    %v21 = vld [vmem:[%s2 + $0x18] sm:$0xff]
    %v22 = vld [vmem:[%s0] sm:$0xff]
    %v23 = vld [vmem:[%s0 + $0x8] sm:$0xff]
    %25 = vset.pattern.permute.xlu0 0
    %26 = vperm.xlu0 %25, %v18
    %v27 = vpop.permute.xlu0 %26
    %30 = vset.pattern.permute.xlu0 0
    %31 = vperm.xlu0 %30, %v19
    %v32 = vpop.permute.xlu0 %31
    %35 = vset.pattern.permute.xlu0 0
    %36 = vperm.xlu0 %35, %v20
    %v37 = vpop.permute.xlu0 %36
    %40 = vset.pattern.permute.xlu0 0
    %41 = vperm.xlu0 %40, %v21
    %v42 = vpop.permute.xlu0 %41
    %v46 = vperm.slane %v22, 0
    %v47 = vperm.slane %v22, 4
    %v48 = vperm.slane %v23, 0
    %v49 = vperm.slane %v23, 4
    %v54 = vperm.slane %v46, 0
    %v55 = vperm.slane %v47, 0
    %v56 = vperm.slane %v48, 0
    %v57 = vperm.slane %v49, 0
    %v58 = vmul.f32 %v27, %v54
    %v59 = vmul.f32 %v27, %v55
    %v60 = vmul.f32 %v27, %v56
    %v61 = vmul.f32 %v27, %v57
    %v62 = vmul.f32 %v32, %v54
    %v63 = vmul.f32 %v32, %v55
    %v64 = vmul.f32 %v32, %v56
    %v65 = vmul.f32 %v32, %v57
    %v66 = vmul.f32 %v37, %v54
    %v67 = vmul.f32 %v37, %v55
    %v68 = vmul.f32 %v37, %v56
    %v69 = vmul.f32 %v37, %v57
    %v70 = vmul.f32 %v42, %v54
    %v71 = vmul.f32 %v42, %v55
    %v72 = vmul.f32 %v42, %v56
    %v73 = vmul.f32 %v42, %v57
    %74 = vset.pattern.permute.xlu0 4
    %75 = vperm.xlu0 %74, %v18
    %v76 = vpop.permute.xlu0 %75
    %78 = vset.pattern.permute.xlu0 4
    %79 = vperm.xlu0 %78, %v19
    %v80 = vpop.permute.xlu0 %79
    %82 = vset.pattern.permute.xlu0 4
    %83 = vperm.xlu0 %82, %v20
    %v84 = vpop.permute.xlu0 %83
    %86 = vset.pattern.permute.xlu0 4
    %87 = vperm.xlu0 %86, %v21
    %v88 = vpop.permute.xlu0 %87
    %v90 = vadd.f32 %v76, %v58
    %v91 = vadd.f32 %v76, %v59
    %v92 = vadd.f32 %v76, %v60
    %v93 = vadd.f32 %v76, %v61
    %v94 = vadd.f32 %v80, %v62
    %v95 = vadd.f32 %v80, %v63
    %v96 = vadd.f32 %v80, %v64
    %v97 = vadd.f32 %v80, %v65
    %v98 = vadd.f32 %v84, %v66
    %v99 = vadd.f32 %v84, %v67
    %v100 = vadd.f32 %v84, %v68
    %v101 = vadd.f32 %v84, %v69
    %v102 = vadd.f32 %v88, %v70
    %v103 = vadd.f32 %v88, %v71
    %v104 = vadd.f32 %v88, %v72
    %v105 = vadd.f32 %v88, %v73
    %106 = vset.pattern.permute.xlu0 1
    %107 = vperm.xlu0 %106, %v18
    %v108 = vpop.permute.xlu0 %107
    %110 = vset.pattern.permute.xlu0 1
    %111 = vperm.xlu0 %110, %v19
    %v112 = vpop.permute.xlu0 %111
    %114 = vset.pattern.permute.xlu0 1
    %115 = vperm.xlu0 %114, %v20
    %v116 = vpop.permute.xlu0 %115
    %118 = vset.pattern.permute.xlu0 1
    %119 = vperm.xlu0 %118, %v21
    %v120 = vpop.permute.xlu0 %119
    %v122 = vperm.slane %v22, 1
    %v123 = vperm.slane %v22, 5
    %v124 = vperm.slane %v23, 1
    %v125 = vperm.slane %v23, 5
    %v130 = vperm.slane %v122, 1
    %v131 = vperm.slane %v123, 1
    %v132 = vperm.slane %v124, 1
    %v133 = vperm.slane %v125, 1
    %v134 = vmul.f32 %v108, %v130
    %v135 = vmul.f32 %v108, %v131
    %v136 = vmul.f32 %v108, %v132
    %v137 = vmul.f32 %v108, %v133
    %v138 = vmul.f32 %v112, %v130
    %v139 = vmul.f32 %v112, %v131
    %v140 = vmul.f32 %v112, %v132
    %v141 = vmul.f32 %v112, %v133
    %v142 = vmul.f32 %v116, %v130
    %v143 = vmul.f32 %v116, %v131
    %v144 = vmul.f32 %v116, %v132
    %v145 = vmul.f32 %v116, %v133
    %v146 = vmul.f32 %v120, %v130
    %v147 = vmul.f32 %v120, %v131
    %v148 = vmul.f32 %v120, %v132
    %v149 = vmul.f32 %v120, %v133
    %v150 = vadd.f32 %v90, %v134
    %v151 = vadd.f32 %v91, %v135
    %v152 = vadd.f32 %v92, %v136
    %v153 = vadd.f32 %v93, %v137
    %v154 = vadd.f32 %v94, %v138
    %v155 = vadd.f32 %v95, %v139
    %v156 = vadd.f32 %v96, %v140
    %v157 = vadd.f32 %v97, %v141
    %v158 = vadd.f32 %v98, %v142
    %v159 = vadd.f32 %v99, %v143
    %v160 = vadd.f32 %v100, %v144
    %v161 = vadd.f32 %v101, %v145
    %v162 = vadd.f32 %v102, %v146
    %v163 = vadd.f32 %v103, %v147
    %v164 = vadd.f32 %v104, %v148
    %v165 = vadd.f32 %v105, %v149
    %166 = vset.pattern.permute.xlu0 2
    %167 = vperm.xlu0 %166, %v18
    %v168 = vpop.permute.xlu0 %167
    %170 = vset.pattern.permute.xlu0 2
    %171 = vperm.xlu0 %170, %v19
    %v172 = vpop.permute.xlu0 %171
    %174 = vset.pattern.permute.xlu0 2
    %175 = vperm.xlu0 %174, %v20
    %v176 = vpop.permute.xlu0 %175
    %178 = vset.pattern.permute.xlu0 2
    %179 = vperm.xlu0 %178, %v21
    %v180 = vpop.permute.xlu0 %179
    %v182 = vperm.slane %v22, 2
    %v183 = vperm.slane %v22, 6
    %v184 = vperm.slane %v23, 2
    %v185 = vperm.slane %v23, 6
    %v190 = vperm.slane %v182, 2
    %v191 = vperm.slane %v183, 2
    %v192 = vperm.slane %v184, 2
    %v193 = vperm.slane %v185, 2
    %v194 = vmul.f32 %v168, %v190
    %v195 = vmul.f32 %v168, %v191
    %v196 = vmul.f32 %v168, %v192
    %v197 = vmul.f32 %v168, %v193
    %v198 = vmul.f32 %v172, %v190
    %v199 = vmul.f32 %v172, %v191
    %v200 = vmul.f32 %v172, %v192
    %v201 = vmul.f32 %v172, %v193
    %v202 = vmul.f32 %v176, %v190
    %v203 = vmul.f32 %v176, %v191
    %v204 = vmul.f32 %v176, %v192
    %v205 = vmul.f32 %v176, %v193
    %v206 = vmul.f32 %v180, %v190
    %v207 = vmul.f32 %v180, %v191
    %v208 = vmul.f32 %v180, %v192
    %v209 = vmul.f32 %v180, %v193
    %v210 = vadd.f32 %v150, %v194
    %v211 = vadd.f32 %v151, %v195
    %v212 = vadd.f32 %v152, %v196
    %v213 = vadd.f32 %v153, %v197
    %v214 = vadd.f32 %v154, %v198
    %v215 = vadd.f32 %v155, %v199
    %v216 = vadd.f32 %v156, %v200
    %v217 = vadd.f32 %v157, %v201
    %v218 = vadd.f32 %v158, %v202
    %v219 = vadd.f32 %v159, %v203
    %v220 = vadd.f32 %v160, %v204
    %v221 = vadd.f32 %v161, %v205
    %v222 = vadd.f32 %v162, %v206
    %v223 = vadd.f32 %v163, %v207
    %v224 = vadd.f32 %v164, %v208
    %v225 = vadd.f32 %v165, %v209
    %226 = vset.pattern.permute.xlu0 3
    %227 = vperm.xlu0 %226, %v18
    %v228 = vpop.permute.xlu0 %227
    %230 = vset.pattern.permute.xlu0 3
    %231 = vperm.xlu0 %230, %v19
    %v232 = vpop.permute.xlu0 %231
    %234 = vset.pattern.permute.xlu0 3
    %235 = vperm.xlu0 %234, %v20
    %v236 = vpop.permute.xlu0 %235
    %238 = vset.pattern.permute.xlu0 3
    %239 = vperm.xlu0 %238, %v21
    %v240 = vpop.permute.xlu0 %239
    %v242 = vperm.slane %v22, 3
    %v243 = vperm.slane %v22, 7
    %v244 = vperm.slane %v23, 3
    %v245 = vperm.slane %v23, 7
    %v250 = vperm.slane %v242, 3
    %v251 = vperm.slane %v243, 3
    %v252 = vperm.slane %v244, 3
    %v253 = vperm.slane %v245, 3
    %v254 = vmul.f32 %v228, %v250
    %v255 = vmul.f32 %v228, %v251
    %v256 = vmul.f32 %v228, %v252
    %v257 = vmul.f32 %v228, %v253
    %v258 = vmul.f32 %v232, %v250
    %v259 = vmul.f32 %v232, %v251
    %v260 = vmul.f32 %v232, %v252
    %v261 = vmul.f32 %v232, %v253
    %v262 = vmul.f32 %v236, %v250
    %v263 = vmul.f32 %v236, %v251
    %v264 = vmul.f32 %v236, %v252
    %v265 = vmul.f32 %v236, %v253
    %v266 = vmul.f32 %v240, %v250
    %v267 = vmul.f32 %v240, %v251
    %v268 = vmul.f32 %v240, %v252
    %v269 = vmul.f32 %v240, %v253
    %v270 = vadd.f32 %v210, %v254
    %v271 = vadd.f32 %v211, %v255
    %v272 = vadd.f32 %v212, %v256
    %v273 = vadd.f32 %v213, %v257
    %v274 = vadd.f32 %v214, %v258
    %v275 = vadd.f32 %v215, %v259
    %v276 = vadd.f32 %v216, %v260
    %v277 = vadd.f32 %v217, %v261
    %v278 = vadd.f32 %v218, %v262
    %v279 = vadd.f32 %v219, %v263
    %v280 = vadd.f32 %v220, %v264
    %v281 = vadd.f32 %v221, %v265
    %v282 = vadd.f32 %v222, %v266
    %v283 = vadd.f32 %v223, %v267
    %v284 = vadd.f32 %v224, %v268
    %v285 = vadd.f32 %v225, %v269
    %v286 = vmax.f32 %v270, 0.0
    %v287 = vmax.f32 %v271, 0.0
    %v288 = vmax.f32 %v272, 0.0
    %v289 = vmax.f32 %v273, 0.0
    %v290 = vmax.f32 %v274, 0.0
    %v291 = vmax.f32 %v275, 0.0
    %v292 = vmax.f32 %v276, 0.0
    %v293 = vmax.f32 %v277, 0.0
    %v294 = vmax.f32 %v278, 0.0
    %v295 = vmax.f32 %v279, 0.0
    %v296 = vmax.f32 %v280, 0.0
    %v297 = vmax.f32 %v281, 0.0
    %v298 = vmax.f32 %v282, 0.0
    %v299 = vmax.f32 %v283, 0.0
    %v300 = vmax.f32 %v284, 0.0
    %v301 = vmax.f32 %v285, 0.0
    %v302 = vrot.slane %v286, 4
    %vm303 = vcmask 1047556
    %v304 = vsel %vm303, 0.0, %v302
    %v306 = vunpack.c.l.s4 1983009808
    %v307 = vunpack.c.0.s8 %v306
    %v308 = vperm.slane %v286, %v307
    %v310 = vunpack.c.l.s4 1983009808
    %v311 = vunpack.c.0.s8 %v310
    %v312 = vperm.slane %v304, %v311
    %v313 = vrot.slane %v288, 4
    %v314 = vsel %vm303, 0.0, %v313
    %v316 = vunpack.c.l.s4 1983009808
    %v317 = vunpack.c.0.s8 %v316
    %v318 = vperm.slane %v288, %v317
    %v320 = vunpack.c.l.s4 1983009808
    %v321 = vunpack.c.0.s8 %v320
    %v322 = vperm.slane %v314, %v321
    %v323 = vrot.slane %v318, 4
    %v324 = vsel %vm303, %v323, %v308
    %v325 = vrot.slane %v308, 4
    %v326 = vsel %vm303, %v318, %v325
    %v328 = vunpack.c.l.s4 1934713408
    %v329 = vunpack.c.0.s8 %v328
    %v330 = vperm.slane %v324, %v329
    %v332 = vunpack.c.l.s4 1934713408
    %v333 = vunpack.c.0.s8 %v332
    %v334 = vperm.slane %v326, %v333
    %v335 = vrot.slane %v322, 4
    %v336 = vsel %vm303, %v335, %v312
    %v337 = vrot.slane %v312, 4
    %v338 = vsel %vm303, %v322, %v337
    %v340 = vunpack.c.l.s4 1934713408
    %v341 = vunpack.c.0.s8 %v340
    %v342 = vperm.slane %v336, %v341
    %v344 = vunpack.c.l.s4 1934713408
    %v345 = vunpack.c.0.s8 %v344
    %v346 = vperm.slane %v338, %v345
    %v347 = vrot.slane %v330, 4
    %v348 = vsel %vm303, 0.0, %v347
    %v349 = vrot.slane %v334, 4
    %v350 = vsel %vm303, 0.0, %v349
    %v351 = vrot.slane %v342, 4
    %v352 = vsel %vm303, 0.0, %v351
    %v353 = vrot.slane %v346, 4
    %v354 = vsel %vm303, 0.0, %v353
    %v355 = vrot.slane %v290, 4
    %v356 = vsel %vm303, 0.0, %v355
    %v358 = vunpack.c.l.s4 1983009808
    %v359 = vunpack.c.0.s8 %v358
    %v360 = vperm.slane %v290, %v359
    %v362 = vunpack.c.l.s4 1983009808
    %v363 = vunpack.c.0.s8 %v362
    %v364 = vperm.slane %v356, %v363
    %v365 = vrot.slane %v292, 4
    %v366 = vsel %vm303, 0.0, %v365
    %v368 = vunpack.c.l.s4 1983009808
    %v369 = vunpack.c.0.s8 %v368
    %v370 = vperm.slane %v292, %v369
    %v372 = vunpack.c.l.s4 1983009808
    %v373 = vunpack.c.0.s8 %v372
    %v374 = vperm.slane %v366, %v373
    %v375 = vrot.slane %v370, 4
    %v376 = vsel %vm303, %v375, %v360
    %v377 = vrot.slane %v360, 4
    %v378 = vsel %vm303, %v370, %v377
    %v380 = vunpack.c.l.s4 1934713408
    %v381 = vunpack.c.0.s8 %v380
    %v382 = vperm.slane %v376, %v381
    %v384 = vunpack.c.l.s4 1934713408
    %v385 = vunpack.c.0.s8 %v384
    %v386 = vperm.slane %v378, %v385
    %v387 = vrot.slane %v374, 4
    %v388 = vsel %vm303, %v387, %v364
    %v389 = vrot.slane %v364, 4
    %v390 = vsel %vm303, %v374, %v389
    %v392 = vunpack.c.l.s4 1934713408
    %v393 = vunpack.c.0.s8 %v392
    %v394 = vperm.slane %v388, %v393
    %v396 = vunpack.c.l.s4 1934713408
    %v397 = vunpack.c.0.s8 %v396
    %v398 = vperm.slane %v390, %v397
    %v399 = vrot.slane %v382, 4
    %v400 = vsel %vm303, 0.0, %v399
    %v401 = vrot.slane %v386, 4
    %v402 = vsel %vm303, 0.0, %v401
    %v403 = vrot.slane %v394, 4
    %v404 = vsel %vm303, 0.0, %v403
    %v405 = vrot.slane %v398, 4
    %v406 = vsel %vm303, 0.0, %v405
    %v407 = vrot.slane %v294, 4
    %v408 = vsel %vm303, 0.0, %v407
    %v410 = vunpack.c.l.s4 1983009808
    %v411 = vunpack.c.0.s8 %v410
    %v412 = vperm.slane %v294, %v411
    %v414 = vunpack.c.l.s4 1983009808
    %v415 = vunpack.c.0.s8 %v414
    %v416 = vperm.slane %v408, %v415
    %v417 = vrot.slane %v296, 4
    %v418 = vsel %vm303, 0.0, %v417
    %v420 = vunpack.c.l.s4 1983009808
    %v421 = vunpack.c.0.s8 %v420
    %v422 = vperm.slane %v296, %v421
    %v424 = vunpack.c.l.s4 1983009808
    %v425 = vunpack.c.0.s8 %v424
    %v426 = vperm.slane %v418, %v425
    %v427 = vrot.slane %v422, 4
    %v428 = vsel %vm303, %v427, %v412
    %v429 = vrot.slane %v412, 4
    %v430 = vsel %vm303, %v422, %v429
    %v432 = vunpack.c.l.s4 1934713408
    %v433 = vunpack.c.0.s8 %v432
    %v434 = vperm.slane %v428, %v433
    %v436 = vunpack.c.l.s4 1934713408
    %v437 = vunpack.c.0.s8 %v436
    %v438 = vperm.slane %v430, %v437
    %v439 = vrot.slane %v426, 4
    %v440 = vsel %vm303, %v439, %v416
    %v441 = vrot.slane %v416, 4
    %v442 = vsel %vm303, %v426, %v441
    %v444 = vunpack.c.l.s4 1934713408
    %v445 = vunpack.c.0.s8 %v444
    %v446 = vperm.slane %v440, %v445
    %v448 = vunpack.c.l.s4 1934713408
    %v449 = vunpack.c.0.s8 %v448
    %v450 = vperm.slane %v442, %v449
    %v451 = vrot.slane %v434, 4
    %v452 = vsel %vm303, 0.0, %v451
    %v453 = vrot.slane %v438, 4
    %v454 = vsel %vm303, 0.0, %v453
    %v455 = vrot.slane %v446, 4
    %v456 = vsel %vm303, 0.0, %v455
    %v457 = vrot.slane %v450, 4
    %v458 = vsel %vm303, 0.0, %v457
    %v459 = vrot.slane %v298, 4
    %v460 = vsel %vm303, 0.0, %v459
    %v462 = vunpack.c.l.s4 1983009808
    %v463 = vunpack.c.0.s8 %v462
    %v464 = vperm.slane %v298, %v463
    %v466 = vunpack.c.l.s4 1983009808
    %v467 = vunpack.c.0.s8 %v466
    %v468 = vperm.slane %v460, %v467
    %v469 = vrot.slane %v300, 4
    %v470 = vsel %vm303, 0.0, %v469
    %v472 = vunpack.c.l.s4 1983009808
    %v473 = vunpack.c.0.s8 %v472
    %v474 = vperm.slane %v300, %v473
    %v476 = vunpack.c.l.s4 1983009808
    %v477 = vunpack.c.0.s8 %v476
    %v478 = vperm.slane %v470, %v477
    %v479 = vrot.slane %v474, 4
    %v480 = vsel %vm303, %v479, %v464
    %v481 = vrot.slane %v464, 4
    %v482 = vsel %vm303, %v474, %v481
    %v484 = vunpack.c.l.s4 1934713408
    %v485 = vunpack.c.0.s8 %v484
    %v486 = vperm.slane %v480, %v485
    %v488 = vunpack.c.l.s4 1934713408
    %v489 = vunpack.c.0.s8 %v488
    %v490 = vperm.slane %v482, %v489
    %v491 = vrot.slane %v478, 4
    %v492 = vsel %vm303, %v491, %v468
    %v493 = vrot.slane %v468, 4
    %v494 = vsel %vm303, %v478, %v493
    %v496 = vunpack.c.l.s4 1934713408
    %v497 = vunpack.c.0.s8 %v496
    %v498 = vperm.slane %v492, %v497
    %v500 = vunpack.c.l.s4 1934713408
    %v501 = vunpack.c.0.s8 %v500
    %v502 = vperm.slane %v494, %v501
    %v503 = vrot.slane %v486, 4
    %v504 = vsel %vm303, 0.0, %v503
    %v505 = vrot.slane %v490, 4
    %v506 = vsel %vm303, 0.0, %v505
    %v507 = vrot.slane %v498, 4
    %v508 = vsel %vm303, 0.0, %v507
    %v509 = vrot.slane %v502, 4
    %v510 = vsel %vm303, 0.0, %v509
    %v511 = vrot.slane %v287, 4
    %v512 = vsel %vm303, 0.0, %v511
    %v514 = vunpack.c.l.s4 1983009808
    %v515 = vunpack.c.0.s8 %v514
    %v516 = vperm.slane %v287, %v515
    %v518 = vunpack.c.l.s4 1983009808
    %v519 = vunpack.c.0.s8 %v518
    %v520 = vperm.slane %v512, %v519
    %v521 = vrot.slane %v289, 4
    %v522 = vsel %vm303, 0.0, %v521
    %v524 = vunpack.c.l.s4 1983009808
    %v525 = vunpack.c.0.s8 %v524
    %v526 = vperm.slane %v289, %v525
    %v528 = vunpack.c.l.s4 1983009808
    %v529 = vunpack.c.0.s8 %v528
    %v530 = vperm.slane %v522, %v529
    %v531 = vrot.slane %v526, 4
    %v532 = vsel %vm303, %v531, %v516
    %v533 = vrot.slane %v516, 4
    %v534 = vsel %vm303, %v526, %v533
    %v536 = vunpack.c.l.s4 1934713408
    %v537 = vunpack.c.0.s8 %v536
    %v538 = vperm.slane %v532, %v537
    %v540 = vunpack.c.l.s4 1934713408
    %v541 = vunpack.c.0.s8 %v540
    %v542 = vperm.slane %v534, %v541
    %v543 = vrot.slane %v530, 4
    %v544 = vsel %vm303, %v543, %v520
    %v545 = vrot.slane %v520, 4
    %v546 = vsel %vm303, %v530, %v545
    %v548 = vunpack.c.l.s4 1934713408
    %v549 = vunpack.c.0.s8 %v548
    %v550 = vperm.slane %v544, %v549
    %v552 = vunpack.c.l.s4 1934713408
    %v553 = vunpack.c.0.s8 %v552
    %v554 = vperm.slane %v546, %v553
    %v555 = vrot.slane %v538, 4
    %v556 = vsel %vm303, 0.0, %v555
    %v557 = vrot.slane %v542, 4
    %v558 = vsel %vm303, 0.0, %v557
    %v559 = vrot.slane %v550, 4
    %v560 = vsel %vm303, 0.0, %v559
    %v561 = vrot.slane %v554, 4
    %v562 = vsel %vm303, 0.0, %v561
    %v563 = vrot.slane %v291, 4
    %v564 = vsel %vm303, 0.0, %v563
    %v566 = vunpack.c.l.s4 1983009808
    %v567 = vunpack.c.0.s8 %v566
    %v568 = vperm.slane %v291, %v567
    %v570 = vunpack.c.l.s4 1983009808
    %v571 = vunpack.c.0.s8 %v570
    %v572 = vperm.slane %v564, %v571
    %v573 = vrot.slane %v293, 4
    %v574 = vsel %vm303, 0.0, %v573
    %v576 = vunpack.c.l.s4 1983009808
    %v577 = vunpack.c.0.s8 %v576
    %v578 = vperm.slane %v293, %v577
    %v580 = vunpack.c.l.s4 1983009808
    %v581 = vunpack.c.0.s8 %v580
    %v582 = vperm.slane %v574, %v581
    %v583 = vrot.slane %v578, 4
    %v584 = vsel %vm303, %v583, %v568
    %v585 = vrot.slane %v568, 4
    %v586 = vsel %vm303, %v578, %v585
    %v588 = vunpack.c.l.s4 1934713408
    %v589 = vunpack.c.0.s8 %v588
    %v590 = vperm.slane %v584, %v589
    %v592 = vunpack.c.l.s4 1934713408
    %v593 = vunpack.c.0.s8 %v592
    %v594 = vperm.slane %v586, %v593
    %v595 = vrot.slane %v582, 4
    %v596 = vsel %vm303, %v595, %v572
    %v597 = vrot.slane %v572, 4
    %v598 = vsel %vm303, %v582, %v597
    %v600 = vunpack.c.l.s4 1934713408
    %v601 = vunpack.c.0.s8 %v600
    %v602 = vperm.slane %v596, %v601
    %v604 = vunpack.c.l.s4 1934713408
    %v605 = vunpack.c.0.s8 %v604
    %v606 = vperm.slane %v598, %v605
    %v607 = vrot.slane %v590, 4
    %v608 = vsel %vm303, 0.0, %v607
    %v609 = vrot.slane %v594, 4
    %v610 = vsel %vm303, 0.0, %v609
    %v611 = vrot.slane %v602, 4
    %v612 = vsel %vm303, 0.0, %v611
    %v613 = vrot.slane %v606, 4
    %v614 = vsel %vm303, 0.0, %v613
    %v615 = vrot.slane %v295, 4
    %v616 = vsel %vm303, 0.0, %v615
    %v618 = vunpack.c.l.s4 1983009808
    %v619 = vunpack.c.0.s8 %v618
    %v620 = vperm.slane %v295, %v619
    %v622 = vunpack.c.l.s4 1983009808
    %v623 = vunpack.c.0.s8 %v622
    %v624 = vperm.slane %v616, %v623
    %v625 = vrot.slane %v297, 4
    %v626 = vsel %vm303, 0.0, %v625
    %v628 = vunpack.c.l.s4 1983009808
    %v629 = vunpack.c.0.s8 %v628
    %v630 = vperm.slane %v297, %v629
    %v632 = vunpack.c.l.s4 1983009808
    %v633 = vunpack.c.0.s8 %v632
    %v634 = vperm.slane %v626, %v633
    %v635 = vrot.slane %v630, 4
    %v636 = vsel %vm303, %v635, %v620
    %v637 = vrot.slane %v620, 4
    %v638 = vsel %vm303, %v630, %v637
    %v640 = vunpack.c.l.s4 1934713408
    %v641 = vunpack.c.0.s8 %v640
    %v642 = vperm.slane %v636, %v641
    %v644 = vunpack.c.l.s4 1934713408
    %v645 = vunpack.c.0.s8 %v644
    %v646 = vperm.slane %v638, %v645
    %v647 = vrot.slane %v634, 4
    %v648 = vsel %vm303, %v647, %v624
    %v649 = vrot.slane %v624, 4
    %v650 = vsel %vm303, %v634, %v649
    %v652 = vunpack.c.l.s4 1934713408
    %v653 = vunpack.c.0.s8 %v652
    %v654 = vperm.slane %v648, %v653
    %v656 = vunpack.c.l.s4 1934713408
    %v657 = vunpack.c.0.s8 %v656
    %v658 = vperm.slane %v650, %v657
    %v659 = vrot.slane %v642, 4
    %v660 = vsel %vm303, 0.0, %v659
    %v661 = vrot.slane %v646, 4
    %v662 = vsel %vm303, 0.0, %v661
    %v663 = vrot.slane %v654, 4
    %v664 = vsel %vm303, 0.0, %v663
    %v665 = vrot.slane %v658, 4
    %v666 = vsel %vm303, 0.0, %v665
    %v667 = vrot.slane %v299, 4
    %v668 = vsel %vm303, 0.0, %v667
    %v670 = vunpack.c.l.s4 1983009808
    %v671 = vunpack.c.0.s8 %v670
    %v672 = vperm.slane %v299, %v671
    %v674 = vunpack.c.l.s4 1983009808
    %v675 = vunpack.c.0.s8 %v674
    %v676 = vperm.slane %v668, %v675
    %v677 = vrot.slane %v301, 4
    %v678 = vsel %vm303, 0.0, %v677
    %v680 = vunpack.c.l.s4 1983009808
    %v681 = vunpack.c.0.s8 %v680
    %v682 = vperm.slane %v301, %v681
    %v684 = vunpack.c.l.s4 1983009808
    %v685 = vunpack.c.0.s8 %v684
    %v686 = vperm.slane %v678, %v685
    %v687 = vrot.slane %v682, 4
    %v688 = vsel %vm303, %v687, %v672
    %v689 = vrot.slane %v672, 4
    %v690 = vsel %vm303, %v682, %v689
    %v692 = vunpack.c.l.s4 1934713408
    %v693 = vunpack.c.0.s8 %v692
    %v694 = vperm.slane %v688, %v693
    %v696 = vunpack.c.l.s4 1934713408
    %v697 = vunpack.c.0.s8 %v696
    %v698 = vperm.slane %v690, %v697
    %v699 = vrot.slane %v686, 4
    %v700 = vsel %vm303, %v699, %v676
    %v701 = vrot.slane %v676, 4
    %v702 = vsel %vm303, %v686, %v701
    %v704 = vunpack.c.l.s4 1934713408
    %v705 = vunpack.c.0.s8 %v704
    %v706 = vperm.slane %v700, %v705
    %v708 = vunpack.c.l.s4 1934713408
    %v709 = vunpack.c.0.s8 %v708
    %v710 = vperm.slane %v702, %v709
    %v711 = vrot.slane %v694, 4
    %v712 = vsel %vm303, 0.0, %v711
    %v713 = vrot.slane %v698, 4
    %v714 = vsel %vm303, 0.0, %v713
    %v715 = vrot.slane %v706, 4
    %v716 = vsel %vm303, 0.0, %v715
    %v717 = vrot.slane %v710, 4
    %v718 = vsel %vm303, 0.0, %v717
    %vm719 = vcmask 1041408
    %v720 = vsel %vm719, %v330, 0.0
    %v721 = vsel %vm719, %v538, 0.0
    %v722 = vadd.f32 %v720, %v721
    %723 = vadd.xlane.f32.xlu0 %v722
    %v724 = vpop.xlane.xlu0 %723
    %v725 = vsel %vm719, %v348, 0.0
    %v726 = vsel %vm719, %v556, 0.0
    %v727 = vadd.f32 %v725, %v726
    %728 = vadd.xlane.f32.xlu0 %v727
    %v729 = vpop.xlane.xlu0 %728
    %v730 = vsel %vm719, %v334, 0.0
    %v731 = vsel %vm719, %v542, 0.0
    %v732 = vadd.f32 %v730, %v731
    %733 = vadd.xlane.f32.xlu0 %v732
    %v734 = vpop.xlane.xlu0 %733
    %v735 = vsel %vm719, %v350, 0.0
    %v736 = vsel %vm719, %v558, 0.0
    %v737 = vadd.f32 %v735, %v736
    %738 = vadd.xlane.f32.xlu0 %v737
    %v739 = vpop.xlane.xlu0 %738
    %v740 = vsel %vm719, %v342, 0.0
    %v741 = vsel %vm719, %v550, 0.0
    %v742 = vadd.f32 %v740, %v741
    %743 = vadd.xlane.f32.xlu0 %v742
    %v744 = vpop.xlane.xlu0 %743
    %v745 = vsel %vm719, %v352, 0.0
    %v746 = vsel %vm719, %v560, 0.0
    %v747 = vadd.f32 %v745, %v746
    %748 = vadd.xlane.f32.xlu0 %v747
    %v749 = vpop.xlane.xlu0 %748
    %v750 = vsel %vm719, %v346, 0.0
    %v751 = vsel %vm719, %v554, 0.0
    %v752 = vadd.f32 %v750, %v751
    %753 = vadd.xlane.f32.xlu0 %v752
    %v754 = vpop.xlane.xlu0 %753
    %v755 = vsel %vm719, %v354, 0.0
    %v756 = vsel %vm719, %v562, 0.0
    %v757 = vadd.f32 %v755, %v756
    %758 = vadd.xlane.f32.xlu0 %v757
    %v759 = vpop.xlane.xlu0 %758
    %v760 = vsel %vm719, %v382, 0.0
    %v761 = vsel %vm719, %v590, 0.0
    %v762 = vadd.f32 %v760, %v761
    %763 = vadd.xlane.f32.xlu0 %v762
    %v764 = vpop.xlane.xlu0 %763
    %v765 = vsel %vm719, %v400, 0.0
    %v766 = vsel %vm719, %v608, 0.0
    %v767 = vadd.f32 %v765, %v766
    %768 = vadd.xlane.f32.xlu0 %v767
    %v769 = vpop.xlane.xlu0 %768
    %v770 = vsel %vm719, %v386, 0.0
    %v771 = vsel %vm719, %v594, 0.0
    %v772 = vadd.f32 %v770, %v771
    %773 = vadd.xlane.f32.xlu0 %v772
    %v774 = vpop.xlane.xlu0 %773
    %v775 = vsel %vm719, %v402, 0.0
    %v776 = vsel %vm719, %v610, 0.0
    %v777 = vadd.f32 %v775, %v776
    %778 = vadd.xlane.f32.xlu0 %v777
    %v779 = vpop.xlane.xlu0 %778
    %v780 = vsel %vm719, %v394, 0.0
    %v781 = vsel %vm719, %v602, 0.0
    %v782 = vadd.f32 %v780, %v781
    %783 = vadd.xlane.f32.xlu0 %v782
    %v784 = vpop.xlane.xlu0 %783
    %v785 = vsel %vm719, %v404, 0.0
    %v786 = vsel %vm719, %v612, 0.0
    %v787 = vadd.f32 %v785, %v786
    %788 = vadd.xlane.f32.xlu0 %v787
    %v789 = vpop.xlane.xlu0 %788
    %v790 = vsel %vm719, %v398, 0.0
    %v791 = vsel %vm719, %v606, 0.0
    %v792 = vadd.f32 %v790, %v791
    %793 = vadd.xlane.f32.xlu0 %v792
    %v794 = vpop.xlane.xlu0 %793
    %v795 = vsel %vm719, %v406, 0.0
    %v796 = vsel %vm719, %v614, 0.0
    %v797 = vadd.f32 %v795, %v796
    %798 = vadd.xlane.f32.xlu0 %v797
    %v799 = vpop.xlane.xlu0 %798
    %v800 = vsel %vm719, %v434, 0.0
    %v801 = vsel %vm719, %v642, 0.0
    %v802 = vadd.f32 %v800, %v801
    %803 = vadd.xlane.f32.xlu0 %v802
    %v804 = vpop.xlane.xlu0 %803
    %v805 = vsel %vm719, %v452, 0.0
    %v806 = vsel %vm719, %v660, 0.0
    %v807 = vadd.f32 %v805, %v806
    %808 = vadd.xlane.f32.xlu0 %v807
    %v809 = vpop.xlane.xlu0 %808
    %v810 = vsel %vm719, %v438, 0.0
    %v811 = vsel %vm719, %v646, 0.0
    %v812 = vadd.f32 %v810, %v811
    %813 = vadd.xlane.f32.xlu0 %v812
    %v814 = vpop.xlane.xlu0 %813
    %v815 = vsel %vm719, %v454, 0.0
    %v816 = vsel %vm719, %v662, 0.0
    %v817 = vadd.f32 %v815, %v816
    %818 = vadd.xlane.f32.xlu0 %v817
    %v819 = vpop.xlane.xlu0 %818
    %v820 = vsel %vm719, %v446, 0.0
    %v821 = vsel %vm719, %v654, 0.0
    %v822 = vadd.f32 %v820, %v821
    %823 = vadd.xlane.f32.xlu0 %v822
    %v824 = vpop.xlane.xlu0 %823
    %v825 = vsel %vm719, %v456, 0.0
    %v826 = vsel %vm719, %v664, 0.0
    %v827 = vadd.f32 %v825, %v826
    %828 = vadd.xlane.f32.xlu0 %v827
    %v829 = vpop.xlane.xlu0 %828
    %v830 = vsel %vm719, %v450, 0.0
    %v831 = vsel %vm719, %v658, 0.0
    %v832 = vadd.f32 %v830, %v831
    %833 = vadd.xlane.f32.xlu0 %v832
    %v834 = vpop.xlane.xlu0 %833
    %v835 = vsel %vm719, %v458, 0.0
    %v836 = vsel %vm719, %v666, 0.0
    %v837 = vadd.f32 %v835, %v836
    %838 = vadd.xlane.f32.xlu0 %v837
    %v839 = vpop.xlane.xlu0 %838
    %v840 = vsel %vm719, %v486, 0.0
    %v841 = vsel %vm719, %v694, 0.0
    %v842 = vadd.f32 %v840, %v841
    %843 = vadd.xlane.f32.xlu0 %v842
    %v844 = vpop.xlane.xlu0 %843
    %v845 = vsel %vm719, %v504, 0.0
    %v846 = vsel %vm719, %v712, 0.0
    %v847 = vadd.f32 %v845, %v846
    %848 = vadd.xlane.f32.xlu0 %v847
    %v849 = vpop.xlane.xlu0 %848
    %v850 = vsel %vm719, %v490, 0.0
    %v851 = vsel %vm719, %v698, 0.0
    %v852 = vadd.f32 %v850, %v851
    %853 = vadd.xlane.f32.xlu0 %v852
    %v854 = vpop.xlane.xlu0 %853
    %v855 = vsel %vm719, %v506, 0.0
    %v856 = vsel %vm719, %v714, 0.0
    %v857 = vadd.f32 %v855, %v856
    %858 = vadd.xlane.f32.xlu0 %v857
    %v859 = vpop.xlane.xlu0 %858
    %v860 = vsel %vm719, %v498, 0.0
    %v861 = vsel %vm719, %v706, 0.0
    %v862 = vadd.f32 %v860, %v861
    %863 = vadd.xlane.f32.xlu0 %v862
    %v864 = vpop.xlane.xlu0 %863
    %v865 = vsel %vm719, %v508, 0.0
    %v866 = vsel %vm719, %v716, 0.0
    %v867 = vadd.f32 %v865, %v866
    %868 = vadd.xlane.f32.xlu0 %v867
    %v869 = vpop.xlane.xlu0 %868
    %v870 = vsel %vm719, %v502, 0.0
    %v871 = vsel %vm719, %v710, 0.0
    %v872 = vadd.f32 %v870, %v871
    %873 = vadd.xlane.f32.xlu0 %v872
    %v874 = vpop.xlane.xlu0 %873
    %v875 = vsel %vm719, %v510, 0.0
    %v876 = vsel %vm719, %v718, 0.0
    %v877 = vadd.f32 %v875, %v876
    %878 = vadd.xlane.f32.xlu0 %v877
    %v879 = vpop.xlane.xlu0 %878
    %v880 = vrcp.pop 256.0
    %v881 = vmul.f32 256.0, %v880
    %v882 = vsub.f32 1.0, %v881
    %v883 = vmul.f32 %v880, %v882
    %v884 = vadd.f32 %v880, %v883
    %vm885 = vweird.f32 %v880
    %v886 = vsel %vm885, %v880, %v884
    %v887 = vmul.f32 %v724, %v886
    %v888 = vmul.f32 %v729, %v886
    %v889 = vmul.f32 %v734, %v886
    %v890 = vmul.f32 %v739, %v886
    %v891 = vmul.f32 %v744, %v886
    %v892 = vmul.f32 %v749, %v886
    %v893 = vmul.f32 %v754, %v886
    %v894 = vmul.f32 %v759, %v886
    %v895 = vmul.f32 %v764, %v886
    %v896 = vmul.f32 %v769, %v886
    %v897 = vmul.f32 %v774, %v886
    %v898 = vmul.f32 %v779, %v886
    %v899 = vmul.f32 %v784, %v886
    %v900 = vmul.f32 %v789, %v886
    %v901 = vmul.f32 %v794, %v886
    %v902 = vmul.f32 %v799, %v886
    %v903 = vmul.f32 %v804, %v886
    %v904 = vmul.f32 %v809, %v886
    %v905 = vmul.f32 %v814, %v886
    %v906 = vmul.f32 %v819, %v886
    %v907 = vmul.f32 %v824, %v886
    %v908 = vmul.f32 %v829, %v886
    %v909 = vmul.f32 %v834, %v886
    %v910 = vmul.f32 %v839, %v886
    %v911 = vmul.f32 %v844, %v886
    %v912 = vmul.f32 %v849, %v886
    %v913 = vmul.f32 %v854, %v886
    %v914 = vmul.f32 %v859, %v886
    %v915 = vmul.f32 %v864, %v886
    %v916 = vmul.f32 %v869, %v886
    %v917 = vmul.f32 %v874, %v886
    %v918 = vmul.f32 %v879, %v886
    %v919 = vld [vmem:[%s3] sm:$0xff]
    %v920 = vld [vmem:[%s3 + $0x8] sm:$0xff]
    %v921 = vld [vmem:[%s3 + $0x10] sm:$0xff]
    %v922 = vld [vmem:[%s3 + $0x18] sm:$0xff]
    %v923 = vld [vmem:[%s3 + $0x20] sm:$0x1]
    %v924 = vperm.slane %v923, 0
    %v957 = vlaneseq
    %v958 = vand.u32 %v957, 127
    %v959 = vperm.slane %v887, %v958
    %v960 = vperm.slane %v888, %v958
    %v961 = vperm.slane %v889, %v958
    %v962 = vperm.slane %v890, %v958
    %v963 = vperm.slane %v891, %v958
    %v964 = vperm.slane %v892, %v958
    %v965 = vperm.slane %v893, %v958
    %v966 = vperm.slane %v894, %v958
    %v967 = vperm.slane %v895, %v958
    %v968 = vperm.slane %v896, %v958
    %v969 = vperm.slane %v897, %v958
    %v970 = vperm.slane %v898, %v958
    %v971 = vperm.slane %v899, %v958
    %v972 = vperm.slane %v900, %v958
    %v973 = vperm.slane %v901, %v958
    %v974 = vperm.slane %v902, %v958
    %v975 = vperm.slane %v903, %v958
    %v976 = vperm.slane %v904, %v958
    %v977 = vperm.slane %v905, %v958
    %v978 = vperm.slane %v906, %v958
    %v979 = vperm.slane %v907, %v958
    %v980 = vperm.slane %v908, %v958
    %v981 = vperm.slane %v909, %v958
    %v982 = vperm.slane %v910, %v958
    %v983 = vperm.slane %v911, %v958
    %v984 = vperm.slane %v912, %v958
    %v985 = vperm.slane %v913, %v958
    %v986 = vperm.slane %v914, %v958
    %v987 = vperm.slane %v915, %v958
    %v988 = vperm.slane %v916, %v958
    %v989 = vperm.slane %v917, %v958
    %v990 = vperm.slane %v918, %v958
    %vm991 = vcmask 1041409
    %v992 = vsel %vm991, %v960, %v959
    %vm993 = vcmask 1042434
    %v994 = vsel %vm993, %v961, %v992
    %vm995 = vcmask 1043459
    %v996 = vsel %vm995, %v962, %v994
    %vm997 = vcmask 1044484
    %v998 = vsel %vm997, %v963, %v996
    %vm999 = vcmask 1045509
    %v1000 = vsel %vm999, %v964, %v998
    %vm1001 = vcmask 1046534
    %v1002 = vsel %vm1001, %v965, %v1000
    %vm1003 = vcmask 1047559
    %v1004 = vsel %vm1003, %v966, %v1002
    %v1005 = vsel %vm991, %v968, %v967
    %v1006 = vsel %vm993, %v969, %v1005
    %v1007 = vsel %vm995, %v970, %v1006
    %v1008 = vsel %vm997, %v971, %v1007
    %v1009 = vsel %vm999, %v972, %v1008
    %v1010 = vsel %vm1001, %v973, %v1009
    %v1011 = vsel %vm1003, %v974, %v1010
    %v1012 = vsel %vm991, %v976, %v975
    %v1013 = vsel %vm993, %v977, %v1012
    %v1014 = vsel %vm995, %v978, %v1013
    %v1015 = vsel %vm997, %v979, %v1014
    %v1016 = vsel %vm999, %v980, %v1015
    %v1017 = vsel %vm1001, %v981, %v1016
    %v1018 = vsel %vm1003, %v982, %v1017
    %v1019 = vsel %vm991, %v984, %v983
    %v1020 = vsel %vm993, %v985, %v1019
    %v1021 = vsel %vm995, %v986, %v1020
    %v1022 = vsel %vm997, %v987, %v1021
    %v1023 = vsel %vm999, %v988, %v1022
    %v1024 = vsel %vm1001, %v989, %v1023
    %v1025 = vsel %vm1003, %v990, %v1024
    %1030 = vxpose.xlu0.b32.start [1/16] %v1004, 128
    %1031 = vxpose.xlu0.b32.cont [2/16] %v1011, 128
    %1032 = vxpose.xlu0.b32.cont [3/16] %v1018, 128
    %1033 = vxpose.xlu0.b32.cont [4/16] %v1025, 128
    %1034 = vxpose.xlu0.b32.cont [5/16] 0.0, 128
    %1035 = vxpose.xlu0.b32.cont [6/16] 0.0, 128
    %1036 = vxpose.xlu0.b32.cont [7/16] 0.0, 128
    %1037 = vxpose.xlu0.b32.cont [8/16] 0.0, 128
    %1038 = vxpose.xlu0.b32.cont [9/16] 0.0, 128
    %1039 = vxpose.xlu0.b32.cont [10/16] 0.0, 128
    %1040 = vxpose.xlu0.b32.cont [11/16] 0.0, 128
    %1041 = vxpose.xlu0.b32.cont [12/16] 0.0, 128
    %1042 = vxpose.xlu0.b32.cont [13/16] 0.0, 128
    %1043 = vxpose.xlu0.b32.cont [14/16] 0.0, 128
    %1044 = vxpose.xlu0.b32.cont [15/16] 0.0, 128
    %1045 = vxpose.xlu0.b32.end [16/16] 0.0, 128
    %v1046 = vpop.trf.xlu0
    %v1047 = vpop.trf.xlu0
    %v1048 = vpop.trf.xlu0
    %v1049 = vpop.trf.xlu0
    %v1050 = vpop.trf.xlu0
    %v1051 = vpop.trf.xlu0
    %v1052 = vpop.trf.xlu0
    %v1053 = vpop.trf.xlu0
    %v1054 = vpop.trf.xlu0
    %v1055 = vpop.trf.xlu0
    %v1056 = vpop.trf.xlu0
    %v1057 = vpop.trf.xlu0
    %v1058 = vpop.trf.xlu0
    %v1059 = vpop.trf.xlu0
    %v1060 = vpop.trf.xlu0
    %v1061 = vpop.trf.xlu0
    %vm1062 = vcmask 261120
    %v1064 = vsel %vm1062, %v1046, 0
    %1066 = vmatpush.msra.mxu0 0.0
    %1067 = vmatpush.msra.mxu0 0.0
    %1068 = vmatpush.msra.mxu0 0.0
    %1069 = vmatpush.msra.mxu0 0.0
    %1070 = vmatpush.msra.mxu0 0.0
    %1071 = vmatpush.msra.mxu0 0.0
    %1072 = vmatpush.msra.mxu0 0.0
    %1073 = vmatpush.msra.mxu0 0.0
    %1074 = vmatpush.msra.mxu0 0.0
    %1075 = vmatpush.msra.mxu0 0.0
    %1076 = vmatpush.msra.mxu0 0.0
    %1077 = vmatpush.msra.mxu0 0.0
    %1078 = vmatpush.msra.mxu0 %v922
    %1079 = vmatpush.msra.mxu0 %v921
    %1080 = vmatpush.msra.mxu0 %v920
    %1081 = vmatpush.msra.mxu0 %v919
    %1082 = vmatmul.f32.gmra.mxu0 %v1064
    %v1083 = vpop.f32.mrf.mxu0
    %v1084 = vadd.f32 %v924, %v1083
    %1085 = vdwg.mxu0
    %1086 = vst [vmem:[#allocation2] sm:$0x3] 0.0
    %vm1087 = vcmask 58368
    %1088 = vst.msk [vmem:[#allocation2] sm:$0x3] %vm1087, %v1084
    %v1089 = vld [vmem:[%s1] sm:$0xff]
    %v1090 = vld [vmem:[%s1 + $0x8] sm:$0xff]
    %v1093 = vperm.slane %v1089, 0
    %v1094 = vperm.slane %v1089, 4
    %v1095 = vperm.slane %v1090, 0
    %v1096 = vperm.slane %v1090, 4
    %v1101 = vperm.slane %v1093, 0
    %v1102 = vperm.slane %v1094, 0
    %v1103 = vperm.slane %v1095, 0
    %v1104 = vperm.slane %v1096, 0
    %v1105 = vmul.f32 %v27, %v1101
    %v1106 = vmul.f32 %v27, %v1102
    %v1107 = vmul.f32 %v27, %v1103
    %v1108 = vmul.f32 %v27, %v1104
    %v1109 = vmul.f32 %v32, %v1101
    %v1110 = vmul.f32 %v32, %v1102
    %v1111 = vmul.f32 %v32, %v1103
    %v1112 = vmul.f32 %v32, %v1104
    %v1113 = vmul.f32 %v37, %v1101
    %v1114 = vmul.f32 %v37, %v1102
    %v1115 = vmul.f32 %v37, %v1103
    %v1116 = vmul.f32 %v37, %v1104
    %v1117 = vmul.f32 %v42, %v1101
    %v1118 = vmul.f32 %v42, %v1102
    %v1119 = vmul.f32 %v42, %v1103
    %v1120 = vmul.f32 %v42, %v1104
    %v1121 = vadd.f32 %v76, %v1105
    %v1122 = vadd.f32 %v76, %v1106
    %v1123 = vadd.f32 %v76, %v1107
    %v1124 = vadd.f32 %v76, %v1108
    %v1125 = vadd.f32 %v80, %v1109
    %v1126 = vadd.f32 %v80, %v1110
    %v1127 = vadd.f32 %v80, %v1111
    %v1128 = vadd.f32 %v80, %v1112
    %v1129 = vadd.f32 %v84, %v1113
    %v1130 = vadd.f32 %v84, %v1114
    %v1131 = vadd.f32 %v84, %v1115
    %v1132 = vadd.f32 %v84, %v1116
    %v1133 = vadd.f32 %v88, %v1117
    %v1134 = vadd.f32 %v88, %v1118
    %v1135 = vadd.f32 %v88, %v1119
    %v1136 = vadd.f32 %v88, %v1120
    %v1137 = vperm.slane %v1089, 1
    %v1138 = vperm.slane %v1089, 5
    %v1139 = vperm.slane %v1090, 1
    %v1140 = vperm.slane %v1090, 5
    %v1145 = vperm.slane %v1137, 1
    %v1146 = vperm.slane %v1138, 1
    %v1147 = vperm.slane %v1139, 1
    %v1148 = vperm.slane %v1140, 1
    %v1149 = vmul.f32 %v108, %v1145
    %v1150 = vmul.f32 %v108, %v1146
    %v1151 = vmul.f32 %v108, %v1147
    %v1152 = vmul.f32 %v108, %v1148
    %v1153 = vmul.f32 %v112, %v1145
    %v1154 = vmul.f32 %v112, %v1146
    %v1155 = vmul.f32 %v112, %v1147
    %v1156 = vmul.f32 %v112, %v1148
    %v1157 = vmul.f32 %v116, %v1145
    %v1158 = vmul.f32 %v116, %v1146
    %v1159 = vmul.f32 %v116, %v1147
    %v1160 = vmul.f32 %v116, %v1148
    %v1161 = vmul.f32 %v120, %v1145
    %v1162 = vmul.f32 %v120, %v1146
    %v1163 = vmul.f32 %v120, %v1147
    %v1164 = vmul.f32 %v120, %v1148
    %v1165 = vadd.f32 %v1121, %v1149
    %v1166 = vadd.f32 %v1122, %v1150
    %v1167 = vadd.f32 %v1123, %v1151
    %v1168 = vadd.f32 %v1124, %v1152
    %v1169 = vadd.f32 %v1125, %v1153
    %v1170 = vadd.f32 %v1126, %v1154
    %v1171 = vadd.f32 %v1127, %v1155
    %v1172 = vadd.f32 %v1128, %v1156
    %v1173 = vadd.f32 %v1129, %v1157
    %v1174 = vadd.f32 %v1130, %v1158
    %v1175 = vadd.f32 %v1131, %v1159
    %v1176 = vadd.f32 %v1132, %v1160
    %v1177 = vadd.f32 %v1133, %v1161
    %v1178 = vadd.f32 %v1134, %v1162
    %v1179 = vadd.f32 %v1135, %v1163
    %v1180 = vadd.f32 %v1136, %v1164
    %v1181 = vperm.slane %v1089, 2
    %v1182 = vperm.slane %v1089, 6
    %v1183 = vperm.slane %v1090, 2
    %v1184 = vperm.slane %v1090, 6
    %v1189 = vperm.slane %v1181, 2
    %v1190 = vperm.slane %v1182, 2
    %v1191 = vperm.slane %v1183, 2
    %v1192 = vperm.slane %v1184, 2
    %v1193 = vmul.f32 %v168, %v1189
    %v1194 = vmul.f32 %v168, %v1190
    %v1195 = vmul.f32 %v168, %v1191
    %v1196 = vmul.f32 %v168, %v1192
    %v1197 = vmul.f32 %v172, %v1189
    %v1198 = vmul.f32 %v172, %v1190
    %v1199 = vmul.f32 %v172, %v1191
    %v1200 = vmul.f32 %v172, %v1192
    %v1201 = vmul.f32 %v176, %v1189
    %v1202 = vmul.f32 %v176, %v1190
    %v1203 = vmul.f32 %v176, %v1191
    %v1204 = vmul.f32 %v176, %v1192
    %v1205 = vmul.f32 %v180, %v1189
    %v1206 = vmul.f32 %v180, %v1190
    %v1207 = vmul.f32 %v180, %v1191
    %v1208 = vmul.f32 %v180, %v1192
    %v1209 = vadd.f32 %v1165, %v1193
    %v1210 = vadd.f32 %v1166, %v1194
    %v1211 = vadd.f32 %v1167, %v1195
    %v1212 = vadd.f32 %v1168, %v1196
    %v1213 = vadd.f32 %v1169, %v1197
    %v1214 = vadd.f32 %v1170, %v1198
    %v1215 = vadd.f32 %v1171, %v1199
    %v1216 = vadd.f32 %v1172, %v1200
    %v1217 = vadd.f32 %v1173, %v1201
    %v1218 = vadd.f32 %v1174, %v1202
    %v1219 = vadd.f32 %v1175, %v1203
    %v1220 = vadd.f32 %v1176, %v1204
    %v1221 = vadd.f32 %v1177, %v1205
    %v1222 = vadd.f32 %v1178, %v1206
    %v1223 = vadd.f32 %v1179, %v1207
    %v1224 = vadd.f32 %v1180, %v1208
    %v1225 = vperm.slane %v1089, 3
    %v1226 = vperm.slane %v1089, 7
    %v1227 = vperm.slane %v1090, 3
    %v1228 = vperm.slane %v1090, 7
    %v1233 = vperm.slane %v1225, 3
    %v1234 = vperm.slane %v1226, 3
    %v1235 = vperm.slane %v1227, 3
    %v1236 = vperm.slane %v1228, 3
    %v1237 = vmul.f32 %v228, %v1233
    %v1238 = vmul.f32 %v228, %v1234
    %v1239 = vmul.f32 %v228, %v1235
    %v1240 = vmul.f32 %v228, %v1236
    %v1241 = vmul.f32 %v232, %v1233
    %v1242 = vmul.f32 %v232, %v1234
    %v1243 = vmul.f32 %v232, %v1235
    %v1244 = vmul.f32 %v232, %v1236
    %v1245 = vmul.f32 %v236, %v1233
    %v1246 = vmul.f32 %v236, %v1234
    %v1247 = vmul.f32 %v236, %v1235
    %v1248 = vmul.f32 %v236, %v1236
    %v1249 = vmul.f32 %v240, %v1233
    %v1250 = vmul.f32 %v240, %v1234
    %v1251 = vmul.f32 %v240, %v1235
    %v1252 = vmul.f32 %v240, %v1236
    %v1253 = vadd.f32 %v1209, %v1237
    %v1254 = vadd.f32 %v1210, %v1238
    %v1255 = vadd.f32 %v1211, %v1239
    %v1256 = vadd.f32 %v1212, %v1240
    %v1257 = vadd.f32 %v1213, %v1241
    %v1258 = vadd.f32 %v1214, %v1242
    %v1259 = vadd.f32 %v1215, %v1243
    %v1260 = vadd.f32 %v1216, %v1244
    %v1261 = vadd.f32 %v1217, %v1245
    %v1262 = vadd.f32 %v1218, %v1246
    %v1263 = vadd.f32 %v1219, %v1247
    %v1264 = vadd.f32 %v1220, %v1248
    %v1265 = vadd.f32 %v1221, %v1249
    %v1266 = vadd.f32 %v1222, %v1250
    %v1267 = vadd.f32 %v1223, %v1251
    %v1268 = vadd.f32 %v1224, %v1252
    %v1269 = vmax.f32 %v1253, 0.0
    %v1270 = vmax.f32 %v1254, 0.0
    %v1271 = vmax.f32 %v1255, 0.0
    %v1272 = vmax.f32 %v1256, 0.0
    %v1273 = vmax.f32 %v1257, 0.0
    %v1274 = vmax.f32 %v1258, 0.0
    %v1275 = vmax.f32 %v1259, 0.0
    %v1276 = vmax.f32 %v1260, 0.0
    %v1277 = vmax.f32 %v1261, 0.0
    %v1278 = vmax.f32 %v1262, 0.0
    %v1279 = vmax.f32 %v1263, 0.0
    %v1280 = vmax.f32 %v1264, 0.0
    %v1281 = vmax.f32 %v1265, 0.0
    %v1282 = vmax.f32 %v1266, 0.0
    %v1283 = vmax.f32 %v1267, 0.0
    %v1284 = vmax.f32 %v1268, 0.0
    %v1285 = vadd.f32 %v286, %v290
    %v1286 = vadd.f32 %v1285, %v294
    %v1287 = vadd.f32 %v1286, %v298
    %v1288 = vrot.slane %v1287, 4
    %v1289 = vadd.f32 %v1287, %v1288
    %v1290 = vrot.slane %v1289, 2
    %v1291 = vadd.f32 %v1289, %v1290
    %v1292 = vrot.slane %v1291, 1
    %v1293 = vadd.f32 %v1291, %v1292
    %v1294 = vadd.f32 %v287, %v291
    %v1295 = vadd.f32 %v1294, %v295
    %v1296 = vadd.f32 %v1295, %v299
    %v1297 = vrot.slane %v1296, 4
    %v1298 = vadd.f32 %v1296, %v1297
    %v1299 = vrot.slane %v1298, 2
    %v1300 = vadd.f32 %v1298, %v1299
    %v1301 = vrot.slane %v1300, 1
    %v1302 = vadd.f32 %v1300, %v1301
    %v1303 = vadd.f32 %v288, %v292
    %v1304 = vadd.f32 %v1303, %v296
    %v1305 = vadd.f32 %v1304, %v300
    %v1306 = vrot.slane %v1305, 4
    %v1307 = vadd.f32 %v1305, %v1306
    %v1308 = vrot.slane %v1307, 2
    %v1309 = vadd.f32 %v1307, %v1308
    %v1310 = vrot.slane %v1309, 1
    %v1311 = vadd.f32 %v1309, %v1310
    %v1312 = vadd.f32 %v289, %v293
    %v1313 = vadd.f32 %v1312, %v297
    %v1314 = vadd.f32 %v1313, %v301
    %v1315 = vrot.slane %v1314, 4
    %v1316 = vadd.f32 %v1314, %v1315
    %v1317 = vrot.slane %v1316, 2
    %v1318 = vadd.f32 %v1316, %v1317
    %v1319 = vrot.slane %v1318, 1
    %v1320 = vadd.f32 %v1318, %v1319
    %v1321 = vrcp.pop 32.0
    %v1322 = vmul.f32 32.0, %v1321
    %v1323 = vsub.f32 1.0, %v1322
    %v1324 = vmul.f32 %v1321, %v1323
    %v1325 = vadd.f32 %v1321, %v1324
    %vm1326 = vweird.f32 %v1321
    %v1327 = vsel %vm1326, %v1321, %v1325
    %v1328 = vmul.f32 %v1293, %v1327
    %v1329 = vmul.f32 %v1302, %v1327
    %v1330 = vmul.f32 %v1311, %v1327
    %v1331 = vmul.f32 %v1320, %v1327
    %v1332 = vsub.f32 %v286, %v1328
    %v1333 = vsub.f32 %v287, %v1329
    %v1334 = vsub.f32 %v288, %v1330
    %v1335 = vsub.f32 %v289, %v1331
    %v1336 = vsub.f32 %v290, %v1328
    %v1337 = vsub.f32 %v291, %v1329
    %v1338 = vsub.f32 %v292, %v1330
    %v1339 = vsub.f32 %v293, %v1331
    %v1340 = vsub.f32 %v294, %v1328
    %v1341 = vsub.f32 %v295, %v1329
    %v1342 = vsub.f32 %v296, %v1330
    %v1343 = vsub.f32 %v297, %v1331
    %v1344 = vsub.f32 %v298, %v1328
    %v1345 = vsub.f32 %v299, %v1329
    %v1346 = vsub.f32 %v300, %v1330
    %v1347 = vsub.f32 %v301, %v1331
    %v1348 = vmul.f32 %v1332, %v1332
    %v1349 = vmul.f32 %v1333, %v1333
    %v1350 = vmul.f32 %v1334, %v1334
    %v1351 = vmul.f32 %v1335, %v1335
    %v1352 = vmul.f32 %v1336, %v1336
    %v1353 = vmul.f32 %v1337, %v1337
    %v1354 = vmul.f32 %v1338, %v1338
    %v1355 = vmul.f32 %v1339, %v1339
    %v1356 = vmul.f32 %v1340, %v1340
    %v1357 = vmul.f32 %v1341, %v1341
    %v1358 = vmul.f32 %v1342, %v1342
    %v1359 = vmul.f32 %v1343, %v1343
    %v1360 = vmul.f32 %v1344, %v1344
    %v1361 = vmul.f32 %v1345, %v1345
    %v1362 = vmul.f32 %v1346, %v1346
    %v1363 = vmul.f32 %v1347, %v1347
    %v1364 = vadd.f32 %v1348, %v1352
    %v1365 = vadd.f32 %v1364, %v1356
    %v1366 = vadd.f32 %v1365, %v1360
    %v1367 = vrot.slane %v1366, 4
    %v1368 = vadd.f32 %v1366, %v1367
    %v1369 = vrot.slane %v1368, 2
    %v1370 = vadd.f32 %v1368, %v1369
    %v1371 = vrot.slane %v1370, 1
    %v1372 = vadd.f32 %v1370, %v1371
    %v1373 = vadd.f32 %v1349, %v1353
    %v1374 = vadd.f32 %v1373, %v1357
    %v1375 = vadd.f32 %v1374, %v1361
    %v1376 = vrot.slane %v1375, 4
    %v1377 = vadd.f32 %v1375, %v1376
    %v1378 = vrot.slane %v1377, 2
    %v1379 = vadd.f32 %v1377, %v1378
    %v1380 = vrot.slane %v1379, 1
    %v1381 = vadd.f32 %v1379, %v1380
    %v1382 = vadd.f32 %v1350, %v1354
    %v1383 = vadd.f32 %v1382, %v1358
    %v1384 = vadd.f32 %v1383, %v1362
    %v1385 = vrot.slane %v1384, 4
    %v1386 = vadd.f32 %v1384, %v1385
    %v1387 = vrot.slane %v1386, 2
    %v1388 = vadd.f32 %v1386, %v1387
    %v1389 = vrot.slane %v1388, 1
    %v1390 = vadd.f32 %v1388, %v1389
    %v1391 = vadd.f32 %v1351, %v1355
    %v1392 = vadd.f32 %v1391, %v1359
    %v1393 = vadd.f32 %v1392, %v1363
    %v1394 = vrot.slane %v1393, 4
    %v1395 = vadd.f32 %v1393, %v1394
    %v1396 = vrot.slane %v1395, 2
    %v1397 = vadd.f32 %v1395, %v1396
    %v1398 = vrot.slane %v1397, 1
    %v1399 = vadd.f32 %v1397, %v1398
    %v1400 = vadd.f32 %v1372, 1e-16
    %v1401 = vadd.f32 %v1381, 1e-16
    %v1402 = vadd.f32 %v1390, 1e-16
    %v1403 = vadd.f32 %v1399, 1e-16
    %v1404 = vrsqrt.pop %v1400
    %v1405 = vmul.f32 %v1404, %v1400
    %v1406 = vmul.f32 %v1405, %v1404
    %v1407 = vmul.f32 0.5, %v1406
    %v1408 = vsub.f32 1.5, %v1407
    %v1409 = vmul.f32 %v1404, %v1408
    %vm1410 = vweird.f32 %v1400
    %vm1411 = vweird.f32 %v1404
    %vm1412 = vmor %vm1410, %vm1411
    %v1413 = vsel %vm1412, %v1404, %v1409
    %v1414 = vrsqrt.pop %v1401
    %v1415 = vmul.f32 %v1414, %v1401
    %v1416 = vmul.f32 %v1415, %v1414
    %v1417 = vmul.f32 0.5, %v1416
    %v1418 = vsub.f32 1.5, %v1417
    %v1419 = vmul.f32 %v1414, %v1418
    %vm1420 = vweird.f32 %v1401
    %vm1421 = vweird.f32 %v1414
    %vm1422 = vmor %vm1420, %vm1421
    %v1423 = vsel %vm1422, %v1414, %v1419
    %v1424 = vrsqrt.pop %v1402
    %v1425 = vmul.f32 %v1424, %v1402
    %v1426 = vmul.f32 %v1425, %v1424
    %v1427 = vmul.f32 0.5, %v1426
    %v1428 = vsub.f32 1.5, %v1427
    %v1429 = vmul.f32 %v1424, %v1428
    %vm1430 = vweird.f32 %v1402
    %vm1431 = vweird.f32 %v1424
    %vm1432 = vmor %vm1430, %vm1431
    %v1433 = vsel %vm1432, %v1424, %v1429
    %v1434 = vrsqrt.pop %v1403
    %v1435 = vmul.f32 %v1434, %v1403
    %v1436 = vmul.f32 %v1435, %v1434
    %v1437 = vmul.f32 0.5, %v1436
    %v1438 = vsub.f32 1.5, %v1437
    %v1439 = vmul.f32 %v1434, %v1438
    %vm1440 = vweird.f32 %v1403
    %vm1441 = vweird.f32 %v1434
    %vm1442 = vmor %vm1440, %vm1441
    %v1443 = vsel %vm1442, %v1434, %v1439
    %v1444 = vmul.f32 %v1332, %v1413
    %v1445 = vmul.f32 %v1333, %v1423
    %v1446 = vmul.f32 %v1334, %v1433
    %v1447 = vmul.f32 %v1335, %v1443
    %v1448 = vmul.f32 %v1336, %v1413
    %v1449 = vmul.f32 %v1337, %v1423
    %v1450 = vmul.f32 %v1338, %v1433
    %v1451 = vmul.f32 %v1339, %v1443
    %v1452 = vmul.f32 %v1340, %v1413
    %v1453 = vmul.f32 %v1341, %v1423
    %v1454 = vmul.f32 %v1342, %v1433
    %v1455 = vmul.f32 %v1343, %v1443
    %v1456 = vmul.f32 %v1344, %v1413
    %v1457 = vmul.f32 %v1345, %v1423
    %v1458 = vmul.f32 %v1346, %v1433
    %v1459 = vmul.f32 %v1347, %v1443
    %v1460 = vadd.f32 %v1269, %v1273
    %v1461 = vadd.f32 %v1460, %v1277
    %v1462 = vadd.f32 %v1461, %v1281
    %v1463 = vrot.slane %v1462, 4
    %v1464 = vadd.f32 %v1462, %v1463
    %v1465 = vrot.slane %v1464, 2
    %v1466 = vadd.f32 %v1464, %v1465
    %v1467 = vrot.slane %v1466, 1
    %v1468 = vadd.f32 %v1466, %v1467
    %v1469 = vadd.f32 %v1270, %v1274
    %v1470 = vadd.f32 %v1469, %v1278
    %v1471 = vadd.f32 %v1470, %v1282
    %v1472 = vrot.slane %v1471, 4
    %v1473 = vadd.f32 %v1471, %v1472
    %v1474 = vrot.slane %v1473, 2
    %v1475 = vadd.f32 %v1473, %v1474
    %v1476 = vrot.slane %v1475, 1
    %v1477 = vadd.f32 %v1475, %v1476
    %v1478 = vadd.f32 %v1271, %v1275
    %v1479 = vadd.f32 %v1478, %v1279
    %v1480 = vadd.f32 %v1479, %v1283
    %v1481 = vrot.slane %v1480, 4
    %v1482 = vadd.f32 %v1480, %v1481
    %v1483 = vrot.slane %v1482, 2
    %v1484 = vadd.f32 %v1482, %v1483
    %v1485 = vrot.slane %v1484, 1
    %v1486 = vadd.f32 %v1484, %v1485
    %v1487 = vadd.f32 %v1272, %v1276
    %v1488 = vadd.f32 %v1487, %v1280
    %v1489 = vadd.f32 %v1488, %v1284
    %v1490 = vrot.slane %v1489, 4
    %v1491 = vadd.f32 %v1489, %v1490
    %v1492 = vrot.slane %v1491, 2
    %v1493 = vadd.f32 %v1491, %v1492
    %v1494 = vrot.slane %v1493, 1
    %v1495 = vadd.f32 %v1493, %v1494
    %v1496 = vmul.f32 %v1468, %v1327
    %v1497 = vmul.f32 %v1477, %v1327
    %v1498 = vmul.f32 %v1486, %v1327
    %v1499 = vmul.f32 %v1495, %v1327
    %v1500 = vsub.f32 %v1269, %v1496
    %v1501 = vsub.f32 %v1270, %v1497
    %v1502 = vsub.f32 %v1271, %v1498
    %v1503 = vsub.f32 %v1272, %v1499
    %v1504 = vsub.f32 %v1273, %v1496
    %v1505 = vsub.f32 %v1274, %v1497
    %v1506 = vsub.f32 %v1275, %v1498
    %v1507 = vsub.f32 %v1276, %v1499
    %v1508 = vsub.f32 %v1277, %v1496
    %v1509 = vsub.f32 %v1278, %v1497
    %v1510 = vsub.f32 %v1279, %v1498
    %v1511 = vsub.f32 %v1280, %v1499
    %v1512 = vsub.f32 %v1281, %v1496
    %v1513 = vsub.f32 %v1282, %v1497
    %v1514 = vsub.f32 %v1283, %v1498
    %v1515 = vsub.f32 %v1284, %v1499
    %v1516 = vmul.f32 %v1500, %v1500
    %v1517 = vmul.f32 %v1501, %v1501
    %v1518 = vmul.f32 %v1502, %v1502
    %v1519 = vmul.f32 %v1503, %v1503
    %v1520 = vmul.f32 %v1504, %v1504
    %v1521 = vmul.f32 %v1505, %v1505
    %v1522 = vmul.f32 %v1506, %v1506
    %v1523 = vmul.f32 %v1507, %v1507
    %v1524 = vmul.f32 %v1508, %v1508
    %v1525 = vmul.f32 %v1509, %v1509
    %v1526 = vmul.f32 %v1510, %v1510
    %v1527 = vmul.f32 %v1511, %v1511
    %v1528 = vmul.f32 %v1512, %v1512
    %v1529 = vmul.f32 %v1513, %v1513
    %v1530 = vmul.f32 %v1514, %v1514
    %v1531 = vmul.f32 %v1515, %v1515
    %v1532 = vadd.f32 %v1516, %v1520
    %v1533 = vadd.f32 %v1532, %v1524
    %v1534 = vadd.f32 %v1533, %v1528
    %v1535 = vrot.slane %v1534, 4
    %v1536 = vadd.f32 %v1534, %v1535
    %v1537 = vrot.slane %v1536, 2
    %v1538 = vadd.f32 %v1536, %v1537
    %v1539 = vrot.slane %v1538, 1
    %v1540 = vadd.f32 %v1538, %v1539
    %v1541 = vadd.f32 %v1517, %v1521
    %v1542 = vadd.f32 %v1541, %v1525
    %v1543 = vadd.f32 %v1542, %v1529
    %v1544 = vrot.slane %v1543, 4
    %v1545 = vadd.f32 %v1543, %v1544
    %v1546 = vrot.slane %v1545, 2
    %v1547 = vadd.f32 %v1545, %v1546
    %v1548 = vrot.slane %v1547, 1
    %v1549 = vadd.f32 %v1547, %v1548
    %v1550 = vadd.f32 %v1518, %v1522
    %v1551 = vadd.f32 %v1550, %v1526
    %v1552 = vadd.f32 %v1551, %v1530
    %v1553 = vrot.slane %v1552, 4
    %v1554 = vadd.f32 %v1552, %v1553
    %v1555 = vrot.slane %v1554, 2
    %v1556 = vadd.f32 %v1554, %v1555
    %v1557 = vrot.slane %v1556, 1
    %v1558 = vadd.f32 %v1556, %v1557
    %v1559 = vadd.f32 %v1519, %v1523
    %v1560 = vadd.f32 %v1559, %v1527
    %v1561 = vadd.f32 %v1560, %v1531
    %v1562 = vrot.slane %v1561, 4
    %v1563 = vadd.f32 %v1561, %v1562
    %v1564 = vrot.slane %v1563, 2
    %v1565 = vadd.f32 %v1563, %v1564
    %v1566 = vrot.slane %v1565, 1
    %v1567 = vadd.f32 %v1565, %v1566
    %v1568 = vadd.f32 %v1540, 1e-16
    %v1569 = vadd.f32 %v1549, 1e-16
    %v1570 = vadd.f32 %v1558, 1e-16
    %v1571 = vadd.f32 %v1567, 1e-16
    %v1572 = vrsqrt.pop %v1568
    %v1573 = vmul.f32 %v1572, %v1568
    %v1574 = vmul.f32 %v1573, %v1572
    %v1575 = vmul.f32 0.5, %v1574
    %v1576 = vsub.f32 1.5, %v1575
    %v1577 = vmul.f32 %v1572, %v1576
    %vm1578 = vweird.f32 %v1568
    %vm1579 = vweird.f32 %v1572
    %vm1580 = vmor %vm1578, %vm1579
    %v1581 = vsel %vm1580, %v1572, %v1577
    %v1582 = vrsqrt.pop %v1569
    %v1583 = vmul.f32 %v1582, %v1569
    %v1584 = vmul.f32 %v1583, %v1582
    %v1585 = vmul.f32 0.5, %v1584
    %v1586 = vsub.f32 1.5, %v1585
    %v1587 = vmul.f32 %v1582, %v1586
    %vm1588 = vweird.f32 %v1569
    %vm1589 = vweird.f32 %v1582
    %vm1590 = vmor %vm1588, %vm1589
    %v1591 = vsel %vm1590, %v1582, %v1587
    %v1592 = vrsqrt.pop %v1570
    %v1593 = vmul.f32 %v1592, %v1570
    %v1594 = vmul.f32 %v1593, %v1592
    %v1595 = vmul.f32 0.5, %v1594
    %v1596 = vsub.f32 1.5, %v1595
    %v1597 = vmul.f32 %v1592, %v1596
    %vm1598 = vweird.f32 %v1570
    %vm1599 = vweird.f32 %v1592
    %vm1600 = vmor %vm1598, %vm1599
    %v1601 = vsel %vm1600, %v1592, %v1597
    %v1602 = vrsqrt.pop %v1571
    %v1603 = vmul.f32 %v1602, %v1571
    %v1604 = vmul.f32 %v1603, %v1602
    %v1605 = vmul.f32 0.5, %v1604
    %v1606 = vsub.f32 1.5, %v1605
    %v1607 = vmul.f32 %v1602, %v1606
    %vm1608 = vweird.f32 %v1571
    %vm1609 = vweird.f32 %v1602
    %vm1610 = vmor %vm1608, %vm1609
    %v1611 = vsel %vm1610, %v1602, %v1607
    %v1612 = vmul.f32 %v1500, %v1581
    %v1613 = vmul.f32 %v1501, %v1591
    %v1614 = vmul.f32 %v1502, %v1601
    %v1615 = vmul.f32 %v1503, %v1611
    %v1616 = vmul.f32 %v1504, %v1581
    %v1617 = vmul.f32 %v1505, %v1591
    %v1618 = vmul.f32 %v1506, %v1601
    %v1619 = vmul.f32 %v1507, %v1611
    %v1620 = vmul.f32 %v1508, %v1581
    %v1621 = vmul.f32 %v1509, %v1591
    %v1622 = vmul.f32 %v1510, %v1601
    %v1623 = vmul.f32 %v1511, %v1611
    %v1624 = vmul.f32 %v1512, %v1581
    %v1625 = vmul.f32 %v1513, %v1591
    %v1626 = vmul.f32 %v1514, %v1601
    %v1627 = vmul.f32 %v1515, %v1611
    %v1628 = vrot.slane %v1444, 4
    %v1629 = vsel %vm303, 0.0, %v1628
    %v1631 = vunpack.c.l.s4 1983009808
    %v1632 = vunpack.c.0.s8 %v1631
    %v1633 = vperm.slane %v1444, %v1632
    %v1635 = vunpack.c.l.s4 1983009808
    %v1636 = vunpack.c.0.s8 %v1635
    %v1637 = vperm.slane %v1629, %v1636
    %v1638 = vrot.slane %v1446, 4
    %v1639 = vsel %vm303, 0.0, %v1638
    %v1641 = vunpack.c.l.s4 1983009808
    %v1642 = vunpack.c.0.s8 %v1641
    %v1643 = vperm.slane %v1446, %v1642
    %v1645 = vunpack.c.l.s4 1983009808
    %v1646 = vunpack.c.0.s8 %v1645
    %v1647 = vperm.slane %v1639, %v1646
    %v1648 = vrot.slane %v1643, 4
    %v1649 = vsel %vm303, %v1648, %v1633
    %v1650 = vrot.slane %v1633, 4
    %v1651 = vsel %vm303, %v1643, %v1650
    %v1653 = vunpack.c.l.s4 1934713408
    %v1654 = vunpack.c.0.s8 %v1653
    %v1655 = vperm.slane %v1649, %v1654
    %v1657 = vunpack.c.l.s4 1934713408
    %v1658 = vunpack.c.0.s8 %v1657
    %v1659 = vperm.slane %v1651, %v1658
    %v1660 = vrot.slane %v1647, 4
    %v1661 = vsel %vm303, %v1660, %v1637
    %v1662 = vrot.slane %v1637, 4
    %v1663 = vsel %vm303, %v1647, %v1662
    %v1665 = vunpack.c.l.s4 1934713408
    %v1666 = vunpack.c.0.s8 %v1665
    %v1667 = vperm.slane %v1661, %v1666
    %v1669 = vunpack.c.l.s4 1934713408
    %v1670 = vunpack.c.0.s8 %v1669
    %v1671 = vperm.slane %v1663, %v1670
    %v1672 = vrot.slane %v1655, 4
    %v1673 = vsel %vm303, 0.0, %v1672
    %v1674 = vrot.slane %v1659, 4
    %v1675 = vsel %vm303, 0.0, %v1674
    %v1676 = vrot.slane %v1667, 4
    %v1677 = vsel %vm303, 0.0, %v1676
    %v1678 = vrot.slane %v1671, 4
    %v1679 = vsel %vm303, 0.0, %v1678
    %v1680 = vrot.slane %v1448, 4
    %v1681 = vsel %vm303, 0.0, %v1680
    %v1683 = vunpack.c.l.s4 1983009808
    %v1684 = vunpack.c.0.s8 %v1683
    %v1685 = vperm.slane %v1448, %v1684
    %v1687 = vunpack.c.l.s4 1983009808
    %v1688 = vunpack.c.0.s8 %v1687
    %v1689 = vperm.slane %v1681, %v1688
    %v1690 = vrot.slane %v1450, 4
    %v1691 = vsel %vm303, 0.0, %v1690
    %v1693 = vunpack.c.l.s4 1983009808
    %v1694 = vunpack.c.0.s8 %v1693
    %v1695 = vperm.slane %v1450, %v1694
    %v1697 = vunpack.c.l.s4 1983009808
    %v1698 = vunpack.c.0.s8 %v1697
    %v1699 = vperm.slane %v1691, %v1698
    %v1700 = vrot.slane %v1695, 4
    %v1701 = vsel %vm303, %v1700, %v1685
    %v1702 = vrot.slane %v1685, 4
    %v1703 = vsel %vm303, %v1695, %v1702
    %v1705 = vunpack.c.l.s4 1934713408
    %v1706 = vunpack.c.0.s8 %v1705
    %v1707 = vperm.slane %v1701, %v1706
    %v1709 = vunpack.c.l.s4 1934713408
    %v1710 = vunpack.c.0.s8 %v1709
    %v1711 = vperm.slane %v1703, %v1710
    %v1712 = vrot.slane %v1699, 4
    %v1713 = vsel %vm303, %v1712, %v1689
    %v1714 = vrot.slane %v1689, 4
    %v1715 = vsel %vm303, %v1699, %v1714
    %v1717 = vunpack.c.l.s4 1934713408
    %v1718 = vunpack.c.0.s8 %v1717
    %v1719 = vperm.slane %v1713, %v1718
    %v1721 = vunpack.c.l.s4 1934713408
    %v1722 = vunpack.c.0.s8 %v1721
    %v1723 = vperm.slane %v1715, %v1722
    %v1724 = vrot.slane %v1707, 4
    %v1725 = vsel %vm303, 0.0, %v1724
    %v1726 = vrot.slane %v1711, 4
    %v1727 = vsel %vm303, 0.0, %v1726
    %v1728 = vrot.slane %v1719, 4
    %v1729 = vsel %vm303, 0.0, %v1728
    %v1730 = vrot.slane %v1723, 4
    %v1731 = vsel %vm303, 0.0, %v1730
    %v1732 = vrot.slane %v1452, 4
    %v1733 = vsel %vm303, 0.0, %v1732
    %v1735 = vunpack.c.l.s4 1983009808
    %v1736 = vunpack.c.0.s8 %v1735
    %v1737 = vperm.slane %v1452, %v1736
    %v1739 = vunpack.c.l.s4 1983009808
    %v1740 = vunpack.c.0.s8 %v1739
    %v1741 = vperm.slane %v1733, %v1740
    %v1742 = vrot.slane %v1454, 4
    %v1743 = vsel %vm303, 0.0, %v1742
    %v1745 = vunpack.c.l.s4 1983009808
    %v1746 = vunpack.c.0.s8 %v1745
    %v1747 = vperm.slane %v1454, %v1746
    %v1749 = vunpack.c.l.s4 1983009808
    %v1750 = vunpack.c.0.s8 %v1749
    %v1751 = vperm.slane %v1743, %v1750
    %v1752 = vrot.slane %v1747, 4
    %v1753 = vsel %vm303, %v1752, %v1737
    %v1754 = vrot.slane %v1737, 4
    %v1755 = vsel %vm303, %v1747, %v1754
    %v1757 = vunpack.c.l.s4 1934713408
    %v1758 = vunpack.c.0.s8 %v1757
    %v1759 = vperm.slane %v1753, %v1758
    %v1761 = vunpack.c.l.s4 1934713408
    %v1762 = vunpack.c.0.s8 %v1761
    %v1763 = vperm.slane %v1755, %v1762
    %v1764 = vrot.slane %v1751, 4
    %v1765 = vsel %vm303, %v1764, %v1741
    %v1766 = vrot.slane %v1741, 4
    %v1767 = vsel %vm303, %v1751, %v1766
    %v1769 = vunpack.c.l.s4 1934713408
    %v1770 = vunpack.c.0.s8 %v1769
    %v1771 = vperm.slane %v1765, %v1770
    %v1773 = vunpack.c.l.s4 1934713408
    %v1774 = vunpack.c.0.s8 %v1773
    %v1775 = vperm.slane %v1767, %v1774
    %v1776 = vrot.slane %v1759, 4
    %v1777 = vsel %vm303, 0.0, %v1776
    %v1778 = vrot.slane %v1763, 4
    %v1779 = vsel %vm303, 0.0, %v1778
    %v1780 = vrot.slane %v1771, 4
    %v1781 = vsel %vm303, 0.0, %v1780
    %v1782 = vrot.slane %v1775, 4
    %v1783 = vsel %vm303, 0.0, %v1782
    %v1784 = vrot.slane %v1456, 4
    %v1785 = vsel %vm303, 0.0, %v1784
    %v1787 = vunpack.c.l.s4 1983009808
    %v1788 = vunpack.c.0.s8 %v1787
    %v1789 = vperm.slane %v1456, %v1788
    %v1791 = vunpack.c.l.s4 1983009808
    %v1792 = vunpack.c.0.s8 %v1791
    %v1793 = vperm.slane %v1785, %v1792
    %v1794 = vrot.slane %v1458, 4
    %v1795 = vsel %vm303, 0.0, %v1794
    %v1797 = vunpack.c.l.s4 1983009808
    %v1798 = vunpack.c.0.s8 %v1797
    %v1799 = vperm.slane %v1458, %v1798
    %v1801 = vunpack.c.l.s4 1983009808
    %v1802 = vunpack.c.0.s8 %v1801
    %v1803 = vperm.slane %v1795, %v1802
    %v1804 = vrot.slane %v1799, 4
    %v1805 = vsel %vm303, %v1804, %v1789
    %v1806 = vrot.slane %v1789, 4
    %v1807 = vsel %vm303, %v1799, %v1806
    %v1809 = vunpack.c.l.s4 1934713408
    %v1810 = vunpack.c.0.s8 %v1809
    %v1811 = vperm.slane %v1805, %v1810
    %v1813 = vunpack.c.l.s4 1934713408
    %v1814 = vunpack.c.0.s8 %v1813
    %v1815 = vperm.slane %v1807, %v1814
    %v1816 = vrot.slane %v1803, 4
    %v1817 = vsel %vm303, %v1816, %v1793
    %v1818 = vrot.slane %v1793, 4
    %v1819 = vsel %vm303, %v1803, %v1818
    %v1821 = vunpack.c.l.s4 1934713408
    %v1822 = vunpack.c.0.s8 %v1821
    %v1823 = vperm.slane %v1817, %v1822
    %v1825 = vunpack.c.l.s4 1934713408
    %v1826 = vunpack.c.0.s8 %v1825
    %v1827 = vperm.slane %v1819, %v1826
    %v1828 = vrot.slane %v1811, 4
    %v1829 = vsel %vm303, 0.0, %v1828
    %v1830 = vrot.slane %v1815, 4
    %v1831 = vsel %vm303, 0.0, %v1830
    %v1832 = vrot.slane %v1823, 4
    %v1833 = vsel %vm303, 0.0, %v1832
    %v1834 = vrot.slane %v1827, 4
    %v1835 = vsel %vm303, 0.0, %v1834
    %v1836 = vrot.slane %v1445, 4
    %v1837 = vsel %vm303, 0.0, %v1836
    %v1839 = vunpack.c.l.s4 1983009808
    %v1840 = vunpack.c.0.s8 %v1839
    %v1841 = vperm.slane %v1445, %v1840
    %v1843 = vunpack.c.l.s4 1983009808
    %v1844 = vunpack.c.0.s8 %v1843
    %v1845 = vperm.slane %v1837, %v1844
    %v1846 = vrot.slane %v1447, 4
    %v1847 = vsel %vm303, 0.0, %v1846
    %v1849 = vunpack.c.l.s4 1983009808
    %v1850 = vunpack.c.0.s8 %v1849
    %v1851 = vperm.slane %v1447, %v1850
    %v1853 = vunpack.c.l.s4 1983009808
    %v1854 = vunpack.c.0.s8 %v1853
    %v1855 = vperm.slane %v1847, %v1854
    %v1856 = vrot.slane %v1851, 4
    %v1857 = vsel %vm303, %v1856, %v1841
    %v1858 = vrot.slane %v1841, 4
    %v1859 = vsel %vm303, %v1851, %v1858
    %v1861 = vunpack.c.l.s4 1934713408
    %v1862 = vunpack.c.0.s8 %v1861
    %v1863 = vperm.slane %v1857, %v1862
    %v1865 = vunpack.c.l.s4 1934713408
    %v1866 = vunpack.c.0.s8 %v1865
    %v1867 = vperm.slane %v1859, %v1866
    %v1868 = vrot.slane %v1855, 4
    %v1869 = vsel %vm303, %v1868, %v1845
    %v1870 = vrot.slane %v1845, 4
    %v1871 = vsel %vm303, %v1855, %v1870
    %v1873 = vunpack.c.l.s4 1934713408
    %v1874 = vunpack.c.0.s8 %v1873
    %v1875 = vperm.slane %v1869, %v1874
    %v1877 = vunpack.c.l.s4 1934713408
    %v1878 = vunpack.c.0.s8 %v1877
    %v1879 = vperm.slane %v1871, %v1878
    %v1880 = vrot.slane %v1863, 4
    %v1881 = vsel %vm303, 0.0, %v1880
    %v1882 = vrot.slane %v1867, 4
    %v1883 = vsel %vm303, 0.0, %v1882
    %v1884 = vrot.slane %v1875, 4
    %v1885 = vsel %vm303, 0.0, %v1884
    %v1886 = vrot.slane %v1879, 4
    %v1887 = vsel %vm303, 0.0, %v1886
    %v1888 = vrot.slane %v1449, 4
    %v1889 = vsel %vm303, 0.0, %v1888
    %v1891 = vunpack.c.l.s4 1983009808
    %v1892 = vunpack.c.0.s8 %v1891
    %v1893 = vperm.slane %v1449, %v1892
    %v1895 = vunpack.c.l.s4 1983009808
    %v1896 = vunpack.c.0.s8 %v1895
    %v1897 = vperm.slane %v1889, %v1896
    %v1898 = vrot.slane %v1451, 4
    %v1899 = vsel %vm303, 0.0, %v1898
    %v1901 = vunpack.c.l.s4 1983009808
    %v1902 = vunpack.c.0.s8 %v1901
    %v1903 = vperm.slane %v1451, %v1902
    %v1905 = vunpack.c.l.s4 1983009808
    %v1906 = vunpack.c.0.s8 %v1905
    %v1907 = vperm.slane %v1899, %v1906
    %v1908 = vrot.slane %v1903, 4
    %v1909 = vsel %vm303, %v1908, %v1893
    %v1910 = vrot.slane %v1893, 4
    %v1911 = vsel %vm303, %v1903, %v1910
    %v1913 = vunpack.c.l.s4 1934713408
    %v1914 = vunpack.c.0.s8 %v1913
    %v1915 = vperm.slane %v1909, %v1914
    %v1917 = vunpack.c.l.s4 1934713408
    %v1918 = vunpack.c.0.s8 %v1917
    %v1919 = vperm.slane %v1911, %v1918
    %v1920 = vrot.slane %v1907, 4
    %v1921 = vsel %vm303, %v1920, %v1897
    %v1922 = vrot.slane %v1897, 4
    %v1923 = vsel %vm303, %v1907, %v1922
    %v1925 = vunpack.c.l.s4 1934713408
    %v1926 = vunpack.c.0.s8 %v1925
    %v1927 = vperm.slane %v1921, %v1926
    %v1929 = vunpack.c.l.s4 1934713408
    %v1930 = vunpack.c.0.s8 %v1929
    %v1931 = vperm.slane %v1923, %v1930
    %v1932 = vrot.slane %v1915, 4
    %v1933 = vsel %vm303, 0.0, %v1932
    %v1934 = vrot.slane %v1919, 4
    %v1935 = vsel %vm303, 0.0, %v1934
    %v1936 = vrot.slane %v1927, 4
    %v1937 = vsel %vm303, 0.0, %v1936
    %v1938 = vrot.slane %v1931, 4
    %v1939 = vsel %vm303, 0.0, %v1938
    %v1940 = vrot.slane %v1453, 4
    %v1941 = vsel %vm303, 0.0, %v1940
    %v1943 = vunpack.c.l.s4 1983009808
    %v1944 = vunpack.c.0.s8 %v1943
    %v1945 = vperm.slane %v1453, %v1944
    %v1947 = vunpack.c.l.s4 1983009808
    %v1948 = vunpack.c.0.s8 %v1947
    %v1949 = vperm.slane %v1941, %v1948
    %v1950 = vrot.slane %v1455, 4
    %v1951 = vsel %vm303, 0.0, %v1950
    %v1953 = vunpack.c.l.s4 1983009808
    %v1954 = vunpack.c.0.s8 %v1953
    %v1955 = vperm.slane %v1455, %v1954
    %v1957 = vunpack.c.l.s4 1983009808
    %v1958 = vunpack.c.0.s8 %v1957
    %v1959 = vperm.slane %v1951, %v1958
    %v1960 = vrot.slane %v1955, 4
    %v1961 = vsel %vm303, %v1960, %v1945
    %v1962 = vrot.slane %v1945, 4
    %v1963 = vsel %vm303, %v1955, %v1962
    %v1965 = vunpack.c.l.s4 1934713408
    %v1966 = vunpack.c.0.s8 %v1965
    %v1967 = vperm.slane %v1961, %v1966
    %v1969 = vunpack.c.l.s4 1934713408
    %v1970 = vunpack.c.0.s8 %v1969
    %v1971 = vperm.slane %v1963, %v1970
    %v1972 = vrot.slane %v1959, 4
    %v1973 = vsel %vm303, %v1972, %v1949
    %v1974 = vrot.slane %v1949, 4
    %v1975 = vsel %vm303, %v1959, %v1974
    %v1977 = vunpack.c.l.s4 1934713408
    %v1978 = vunpack.c.0.s8 %v1977
    %v1979 = vperm.slane %v1973, %v1978
    %v1981 = vunpack.c.l.s4 1934713408
    %v1982 = vunpack.c.0.s8 %v1981
    %v1983 = vperm.slane %v1975, %v1982
    %v1984 = vrot.slane %v1967, 4
    %v1985 = vsel %vm303, 0.0, %v1984
    %v1986 = vrot.slane %v1971, 4
    %v1987 = vsel %vm303, 0.0, %v1986
    %v1988 = vrot.slane %v1979, 4
    %v1989 = vsel %vm303, 0.0, %v1988
    %v1990 = vrot.slane %v1983, 4
    %v1991 = vsel %vm303, 0.0, %v1990
    %v1992 = vrot.slane %v1457, 4
    %v1993 = vsel %vm303, 0.0, %v1992
    %v1995 = vunpack.c.l.s4 1983009808
    %v1996 = vunpack.c.0.s8 %v1995
    %v1997 = vperm.slane %v1457, %v1996
    %v1999 = vunpack.c.l.s4 1983009808
    %v2000 = vunpack.c.0.s8 %v1999
    %v2001 = vperm.slane %v1993, %v2000
    %v2002 = vrot.slane %v1459, 4
    %v2003 = vsel %vm303, 0.0, %v2002
    %v2005 = vunpack.c.l.s4 1983009808
    %v2006 = vunpack.c.0.s8 %v2005
    %v2007 = vperm.slane %v1459, %v2006
    %v2009 = vunpack.c.l.s4 1983009808
    %v2010 = vunpack.c.0.s8 %v2009
    %v2011 = vperm.slane %v2003, %v2010
    %v2012 = vrot.slane %v2007, 4
    %v2013 = vsel %vm303, %v2012, %v1997
    %v2014 = vrot.slane %v1997, 4
    %v2015 = vsel %vm303, %v2007, %v2014
    %v2017 = vunpack.c.l.s4 1934713408
    %v2018 = vunpack.c.0.s8 %v2017
    %v2019 = vperm.slane %v2013, %v2018
    %v2021 = vunpack.c.l.s4 1934713408
    %v2022 = vunpack.c.0.s8 %v2021
    %v2023 = vperm.slane %v2015, %v2022
    %v2024 = vrot.slane %v2011, 4
    %v2025 = vsel %vm303, %v2024, %v2001
    %v2026 = vrot.slane %v2001, 4
    %v2027 = vsel %vm303, %v2011, %v2026
    %v2029 = vunpack.c.l.s4 1934713408
    %v2030 = vunpack.c.0.s8 %v2029
    %v2031 = vperm.slane %v2025, %v2030
    %v2033 = vunpack.c.l.s4 1934713408
    %v2034 = vunpack.c.0.s8 %v2033
    %v2035 = vperm.slane %v2027, %v2034
    %v2036 = vrot.slane %v2019, 4
    %v2037 = vsel %vm303, 0.0, %v2036
    %v2038 = vrot.slane %v2023, 4
    %v2039 = vsel %vm303, 0.0, %v2038
    %v2040 = vrot.slane %v2031, 4
    %v2041 = vsel %vm303, 0.0, %v2040
    %v2042 = vrot.slane %v2035, 4
    %v2043 = vsel %vm303, 0.0, %v2042
    %v2044 = vsel %vm719, %v1655, 0.0
    %v2045 = vsel %vm719, %v1863, 0.0
    %v2046 = vadd.f32 %v2044, %v2045
    %2047 = vadd.xlane.f32.xlu0 %v2046
    %v2048 = vpop.xlane.xlu0 %2047
    %v2049 = vsel %vm719, %v1673, 0.0
    %v2050 = vsel %vm719, %v1881, 0.0
    %v2051 = vadd.f32 %v2049, %v2050
    %2052 = vadd.xlane.f32.xlu0 %v2051
    %v2053 = vpop.xlane.xlu0 %2052
    %v2054 = vsel %vm719, %v1659, 0.0
    %v2055 = vsel %vm719, %v1867, 0.0
    %v2056 = vadd.f32 %v2054, %v2055
    %2057 = vadd.xlane.f32.xlu0 %v2056
    %v2058 = vpop.xlane.xlu0 %2057
    %v2059 = vsel %vm719, %v1675, 0.0
    %v2060 = vsel %vm719, %v1883, 0.0
    %v2061 = vadd.f32 %v2059, %v2060
    %2062 = vadd.xlane.f32.xlu0 %v2061
    %v2063 = vpop.xlane.xlu0 %2062
    %v2064 = vsel %vm719, %v1667, 0.0
    %v2065 = vsel %vm719, %v1875, 0.0
    %v2066 = vadd.f32 %v2064, %v2065
    %2067 = vadd.xlane.f32.xlu0 %v2066
    %v2068 = vpop.xlane.xlu0 %2067
    %v2069 = vsel %vm719, %v1677, 0.0
    %v2070 = vsel %vm719, %v1885, 0.0
    %v2071 = vadd.f32 %v2069, %v2070
    %2072 = vadd.xlane.f32.xlu0 %v2071
    %v2073 = vpop.xlane.xlu0 %2072
    %v2074 = vsel %vm719, %v1671, 0.0
    %v2075 = vsel %vm719, %v1879, 0.0
    %v2076 = vadd.f32 %v2074, %v2075
    %2077 = vadd.xlane.f32.xlu0 %v2076
    %v2078 = vpop.xlane.xlu0 %2077
    %v2079 = vsel %vm719, %v1679, 0.0
    %v2080 = vsel %vm719, %v1887, 0.0
    %v2081 = vadd.f32 %v2079, %v2080
    %2082 = vadd.xlane.f32.xlu0 %v2081
    %v2083 = vpop.xlane.xlu0 %2082
    %v2084 = vsel %vm719, %v1707, 0.0
    %v2085 = vsel %vm719, %v1915, 0.0
    %v2086 = vadd.f32 %v2084, %v2085
    %2087 = vadd.xlane.f32.xlu0 %v2086
    %v2088 = vpop.xlane.xlu0 %2087
    %v2089 = vsel %vm719, %v1725, 0.0
    %v2090 = vsel %vm719, %v1933, 0.0
    %v2091 = vadd.f32 %v2089, %v2090
    %2092 = vadd.xlane.f32.xlu0 %v2091
    %v2093 = vpop.xlane.xlu0 %2092
    %v2094 = vsel %vm719, %v1711, 0.0
    %v2095 = vsel %vm719, %v1919, 0.0
    %v2096 = vadd.f32 %v2094, %v2095
    %2097 = vadd.xlane.f32.xlu0 %v2096
    %v2098 = vpop.xlane.xlu0 %2097
    %v2099 = vsel %vm719, %v1727, 0.0
    %v2100 = vsel %vm719, %v1935, 0.0
    %v2101 = vadd.f32 %v2099, %v2100
    %2102 = vadd.xlane.f32.xlu0 %v2101
    %v2103 = vpop.xlane.xlu0 %2102
    %v2104 = vsel %vm719, %v1719, 0.0
    %v2105 = vsel %vm719, %v1927, 0.0
    %v2106 = vadd.f32 %v2104, %v2105
    %2107 = vadd.xlane.f32.xlu0 %v2106
    %v2108 = vpop.xlane.xlu0 %2107
    %v2109 = vsel %vm719, %v1729, 0.0
    %v2110 = vsel %vm719, %v1937, 0.0
    %v2111 = vadd.f32 %v2109, %v2110
    %2112 = vadd.xlane.f32.xlu0 %v2111
    %v2113 = vpop.xlane.xlu0 %2112
    %v2114 = vsel %vm719, %v1723, 0.0
    %v2115 = vsel %vm719, %v1931, 0.0
    %v2116 = vadd.f32 %v2114, %v2115
    %2117 = vadd.xlane.f32.xlu0 %v2116
    %v2118 = vpop.xlane.xlu0 %2117
    %v2119 = vsel %vm719, %v1731, 0.0
    %v2120 = vsel %vm719, %v1939, 0.0
    %v2121 = vadd.f32 %v2119, %v2120
    %2122 = vadd.xlane.f32.xlu0 %v2121
    %v2123 = vpop.xlane.xlu0 %2122
    %v2124 = vsel %vm719, %v1759, 0.0
    %v2125 = vsel %vm719, %v1967, 0.0
    %v2126 = vadd.f32 %v2124, %v2125
    %2127 = vadd.xlane.f32.xlu0 %v2126
    %v2128 = vpop.xlane.xlu0 %2127
    %v2129 = vsel %vm719, %v1777, 0.0
    %v2130 = vsel %vm719, %v1985, 0.0
    %v2131 = vadd.f32 %v2129, %v2130
    %2132 = vadd.xlane.f32.xlu0 %v2131
    %v2133 = vpop.xlane.xlu0 %2132
    %v2134 = vsel %vm719, %v1763, 0.0
    %v2135 = vsel %vm719, %v1971, 0.0
    %v2136 = vadd.f32 %v2134, %v2135
    %2137 = vadd.xlane.f32.xlu0 %v2136
    %v2138 = vpop.xlane.xlu0 %2137
    %v2139 = vsel %vm719, %v1779, 0.0
    %v2140 = vsel %vm719, %v1987, 0.0
    %v2141 = vadd.f32 %v2139, %v2140
    %2142 = vadd.xlane.f32.xlu0 %v2141
    %v2143 = vpop.xlane.xlu0 %2142
    %v2144 = vsel %vm719, %v1771, 0.0
    %v2145 = vsel %vm719, %v1979, 0.0
    %v2146 = vadd.f32 %v2144, %v2145
    %2147 = vadd.xlane.f32.xlu0 %v2146
    %v2148 = vpop.xlane.xlu0 %2147
    %v2149 = vsel %vm719, %v1781, 0.0
    %v2150 = vsel %vm719, %v1989, 0.0
    %v2151 = vadd.f32 %v2149, %v2150
    %2152 = vadd.xlane.f32.xlu0 %v2151
    %v2153 = vpop.xlane.xlu0 %2152
    %v2154 = vsel %vm719, %v1775, 0.0
    %v2155 = vsel %vm719, %v1983, 0.0
    %v2156 = vadd.f32 %v2154, %v2155
    %2157 = vadd.xlane.f32.xlu0 %v2156
    %v2158 = vpop.xlane.xlu0 %2157
    %v2159 = vsel %vm719, %v1783, 0.0
    %v2160 = vsel %vm719, %v1991, 0.0
    %v2161 = vadd.f32 %v2159, %v2160
    %2162 = vadd.xlane.f32.xlu0 %v2161
    %v2163 = vpop.xlane.xlu0 %2162
    %v2164 = vsel %vm719, %v1811, 0.0
    %v2165 = vsel %vm719, %v2019, 0.0
    %v2166 = vadd.f32 %v2164, %v2165
    %2167 = vadd.xlane.f32.xlu0 %v2166
    %v2168 = vpop.xlane.xlu0 %2167
    %v2169 = vsel %vm719, %v1829, 0.0
    %v2170 = vsel %vm719, %v2037, 0.0
    %v2171 = vadd.f32 %v2169, %v2170
    %2172 = vadd.xlane.f32.xlu0 %v2171
    %v2173 = vpop.xlane.xlu0 %2172
    %v2174 = vsel %vm719, %v1815, 0.0
    %v2175 = vsel %vm719, %v2023, 0.0
    %v2176 = vadd.f32 %v2174, %v2175
    %2177 = vadd.xlane.f32.xlu0 %v2176
    %v2178 = vpop.xlane.xlu0 %2177
    %v2179 = vsel %vm719, %v1831, 0.0
    %v2180 = vsel %vm719, %v2039, 0.0
    %v2181 = vadd.f32 %v2179, %v2180
    %2182 = vadd.xlane.f32.xlu0 %v2181
    %v2183 = vpop.xlane.xlu0 %2182
    %v2184 = vsel %vm719, %v1823, 0.0
    %v2185 = vsel %vm719, %v2031, 0.0
    %v2186 = vadd.f32 %v2184, %v2185
    %2187 = vadd.xlane.f32.xlu0 %v2186
    %v2188 = vpop.xlane.xlu0 %2187
    %v2189 = vsel %vm719, %v1833, 0.0
    %v2190 = vsel %vm719, %v2041, 0.0
    %v2191 = vadd.f32 %v2189, %v2190
    %2192 = vadd.xlane.f32.xlu0 %v2191
    %v2193 = vpop.xlane.xlu0 %2192
    %v2194 = vsel %vm719, %v1827, 0.0
    %v2195 = vsel %vm719, %v2035, 0.0
    %v2196 = vadd.f32 %v2194, %v2195
    %2197 = vadd.xlane.f32.xlu0 %v2196
    %v2198 = vpop.xlane.xlu0 %2197
    %v2199 = vsel %vm719, %v1835, 0.0
    %v2200 = vsel %vm719, %v2043, 0.0
    %v2201 = vadd.f32 %v2199, %v2200
    %2202 = vadd.xlane.f32.xlu0 %v2201
    %v2203 = vpop.xlane.xlu0 %2202
    %v2204 = vrot.slane %v1612, 4
    %v2205 = vsel %vm303, 0.0, %v2204
    %v2207 = vunpack.c.l.s4 1983009808
    %v2208 = vunpack.c.0.s8 %v2207
    %v2209 = vperm.slane %v1612, %v2208
    %v2211 = vunpack.c.l.s4 1983009808
    %v2212 = vunpack.c.0.s8 %v2211
    %v2213 = vperm.slane %v2205, %v2212
    %v2214 = vrot.slane %v1614, 4
    %v2215 = vsel %vm303, 0.0, %v2214
    %v2217 = vunpack.c.l.s4 1983009808
    %v2218 = vunpack.c.0.s8 %v2217
    %v2219 = vperm.slane %v1614, %v2218
    %v2221 = vunpack.c.l.s4 1983009808
    %v2222 = vunpack.c.0.s8 %v2221
    %v2223 = vperm.slane %v2215, %v2222
    %v2224 = vrot.slane %v2219, 4
    %v2225 = vsel %vm303, %v2224, %v2209
    %v2226 = vrot.slane %v2209, 4
    %v2227 = vsel %vm303, %v2219, %v2226
    %v2229 = vunpack.c.l.s4 1934713408
    %v2230 = vunpack.c.0.s8 %v2229
    %v2231 = vperm.slane %v2225, %v2230
    %v2233 = vunpack.c.l.s4 1934713408
    %v2234 = vunpack.c.0.s8 %v2233
    %v2235 = vperm.slane %v2227, %v2234
    %v2236 = vrot.slane %v2223, 4
    %v2237 = vsel %vm303, %v2236, %v2213
    %v2238 = vrot.slane %v2213, 4
    %v2239 = vsel %vm303, %v2223, %v2238
    %v2241 = vunpack.c.l.s4 1934713408
    %v2242 = vunpack.c.0.s8 %v2241
    %v2243 = vperm.slane %v2237, %v2242
    %v2245 = vunpack.c.l.s4 1934713408
    %v2246 = vunpack.c.0.s8 %v2245
    %v2247 = vperm.slane %v2239, %v2246
    %v2248 = vrot.slane %v2231, 4
    %v2249 = vsel %vm303, 0.0, %v2248
    %v2250 = vrot.slane %v2235, 4
    %v2251 = vsel %vm303, 0.0, %v2250
    %v2252 = vrot.slane %v2243, 4
    %v2253 = vsel %vm303, 0.0, %v2252
    %v2254 = vrot.slane %v2247, 4
    %v2255 = vsel %vm303, 0.0, %v2254
    %v2256 = vrot.slane %v1616, 4
    %v2257 = vsel %vm303, 0.0, %v2256
    %v2259 = vunpack.c.l.s4 1983009808
    %v2260 = vunpack.c.0.s8 %v2259
    %v2261 = vperm.slane %v1616, %v2260
    %v2263 = vunpack.c.l.s4 1983009808
    %v2264 = vunpack.c.0.s8 %v2263
    %v2265 = vperm.slane %v2257, %v2264
    %v2266 = vrot.slane %v1618, 4
    %v2267 = vsel %vm303, 0.0, %v2266
    %v2269 = vunpack.c.l.s4 1983009808
    %v2270 = vunpack.c.0.s8 %v2269
    %v2271 = vperm.slane %v1618, %v2270
    %v2273 = vunpack.c.l.s4 1983009808
    %v2274 = vunpack.c.0.s8 %v2273
    %v2275 = vperm.slane %v2267, %v2274
    %v2276 = vrot.slane %v2271, 4
    %v2277 = vsel %vm303, %v2276, %v2261
    %v2278 = vrot.slane %v2261, 4
    %v2279 = vsel %vm303, %v2271, %v2278
    %v2281 = vunpack.c.l.s4 1934713408
    %v2282 = vunpack.c.0.s8 %v2281
    %v2283 = vperm.slane %v2277, %v2282
    %v2285 = vunpack.c.l.s4 1934713408
    %v2286 = vunpack.c.0.s8 %v2285
    %v2287 = vperm.slane %v2279, %v2286
    %v2288 = vrot.slane %v2275, 4
    %v2289 = vsel %vm303, %v2288, %v2265
    %v2290 = vrot.slane %v2265, 4
    %v2291 = vsel %vm303, %v2275, %v2290
    %v2293 = vunpack.c.l.s4 1934713408
    %v2294 = vunpack.c.0.s8 %v2293
    %v2295 = vperm.slane %v2289, %v2294
    %v2297 = vunpack.c.l.s4 1934713408
    %v2298 = vunpack.c.0.s8 %v2297
    %v2299 = vperm.slane %v2291, %v2298
    %v2300 = vrot.slane %v2283, 4
    %v2301 = vsel %vm303, 0.0, %v2300
    %v2302 = vrot.slane %v2287, 4
    %v2303 = vsel %vm303, 0.0, %v2302
    %v2304 = vrot.slane %v2295, 4
    %v2305 = vsel %vm303, 0.0, %v2304
    %v2306 = vrot.slane %v2299, 4
    %v2307 = vsel %vm303, 0.0, %v2306
    %v2308 = vrot.slane %v1620, 4
    %v2309 = vsel %vm303, 0.0, %v2308
    %v2311 = vunpack.c.l.s4 1983009808
    %v2312 = vunpack.c.0.s8 %v2311
    %v2313 = vperm.slane %v1620, %v2312
    %v2315 = vunpack.c.l.s4 1983009808
    %v2316 = vunpack.c.0.s8 %v2315
    %v2317 = vperm.slane %v2309, %v2316
    %v2318 = vrot.slane %v1622, 4
    %v2319 = vsel %vm303, 0.0, %v2318
    %v2321 = vunpack.c.l.s4 1983009808
    %v2322 = vunpack.c.0.s8 %v2321
    %v2323 = vperm.slane %v1622, %v2322
    %v2325 = vunpack.c.l.s4 1983009808
    %v2326 = vunpack.c.0.s8 %v2325
    %v2327 = vperm.slane %v2319, %v2326
    %v2328 = vrot.slane %v2323, 4
    %v2329 = vsel %vm303, %v2328, %v2313
    %v2330 = vrot.slane %v2313, 4
    %v2331 = vsel %vm303, %v2323, %v2330
    %v2333 = vunpack.c.l.s4 1934713408
    %v2334 = vunpack.c.0.s8 %v2333
    %v2335 = vperm.slane %v2329, %v2334
    %v2337 = vunpack.c.l.s4 1934713408
    %v2338 = vunpack.c.0.s8 %v2337
    %v2339 = vperm.slane %v2331, %v2338
    %v2340 = vrot.slane %v2327, 4
    %v2341 = vsel %vm303, %v2340, %v2317
    %v2342 = vrot.slane %v2317, 4
    %v2343 = vsel %vm303, %v2327, %v2342
    %v2345 = vunpack.c.l.s4 1934713408
    %v2346 = vunpack.c.0.s8 %v2345
    %v2347 = vperm.slane %v2341, %v2346
    %v2349 = vunpack.c.l.s4 1934713408
    %v2350 = vunpack.c.0.s8 %v2349
    %v2351 = vperm.slane %v2343, %v2350
    %v2352 = vrot.slane %v2335, 4
    %v2353 = vsel %vm303, 0.0, %v2352
    %v2354 = vrot.slane %v2339, 4
    %v2355 = vsel %vm303, 0.0, %v2354
    %v2356 = vrot.slane %v2347, 4
    %v2357 = vsel %vm303, 0.0, %v2356
    %v2358 = vrot.slane %v2351, 4
    %v2359 = vsel %vm303, 0.0, %v2358
    %v2360 = vrot.slane %v1624, 4
    %v2361 = vsel %vm303, 0.0, %v2360
    %v2363 = vunpack.c.l.s4 1983009808
    %v2364 = vunpack.c.0.s8 %v2363
    %v2365 = vperm.slane %v1624, %v2364
    %v2367 = vunpack.c.l.s4 1983009808
    %v2368 = vunpack.c.0.s8 %v2367
    %v2369 = vperm.slane %v2361, %v2368
    %v2370 = vrot.slane %v1626, 4
    %v2371 = vsel %vm303, 0.0, %v2370
    %v2373 = vunpack.c.l.s4 1983009808
    %v2374 = vunpack.c.0.s8 %v2373
    %v2375 = vperm.slane %v1626, %v2374
    %v2377 = vunpack.c.l.s4 1983009808
    %v2378 = vunpack.c.0.s8 %v2377
    %v2379 = vperm.slane %v2371, %v2378
    %v2380 = vrot.slane %v2375, 4
    %v2381 = vsel %vm303, %v2380, %v2365
    %v2382 = vrot.slane %v2365, 4
    %v2383 = vsel %vm303, %v2375, %v2382
    %v2385 = vunpack.c.l.s4 1934713408
    %v2386 = vunpack.c.0.s8 %v2385
    %v2387 = vperm.slane %v2381, %v2386
    %v2389 = vunpack.c.l.s4 1934713408
    %v2390 = vunpack.c.0.s8 %v2389
    %v2391 = vperm.slane %v2383, %v2390
    %v2392 = vrot.slane %v2379, 4
    %v2393 = vsel %vm303, %v2392, %v2369
    %v2394 = vrot.slane %v2369, 4
    %v2395 = vsel %vm303, %v2379, %v2394
    %v2397 = vunpack.c.l.s4 1934713408
    %v2398 = vunpack.c.0.s8 %v2397
    %v2399 = vperm.slane %v2393, %v2398
    %v2401 = vunpack.c.l.s4 1934713408
    %v2402 = vunpack.c.0.s8 %v2401
    %v2403 = vperm.slane %v2395, %v2402
    %v2404 = vrot.slane %v2387, 4
    %v2405 = vsel %vm303, 0.0, %v2404
    %v2406 = vrot.slane %v2391, 4
    %v2407 = vsel %vm303, 0.0, %v2406
    %v2408 = vrot.slane %v2399, 4
    %v2409 = vsel %vm303, 0.0, %v2408
    %v2410 = vrot.slane %v2403, 4
    %v2411 = vsel %vm303, 0.0, %v2410
    %v2412 = vrot.slane %v1613, 4
    %v2413 = vsel %vm303, 0.0, %v2412
    %v2415 = vunpack.c.l.s4 1983009808
    %v2416 = vunpack.c.0.s8 %v2415
    %v2417 = vperm.slane %v1613, %v2416
    %v2419 = vunpack.c.l.s4 1983009808
    %v2420 = vunpack.c.0.s8 %v2419
    %v2421 = vperm.slane %v2413, %v2420
    %v2422 = vrot.slane %v1615, 4
    %v2423 = vsel %vm303, 0.0, %v2422
    %v2425 = vunpack.c.l.s4 1983009808
    %v2426 = vunpack.c.0.s8 %v2425
    %v2427 = vperm.slane %v1615, %v2426
    %v2429 = vunpack.c.l.s4 1983009808
    %v2430 = vunpack.c.0.s8 %v2429
    %v2431 = vperm.slane %v2423, %v2430
    %v2432 = vrot.slane %v2427, 4
    %v2433 = vsel %vm303, %v2432, %v2417
    %v2434 = vrot.slane %v2417, 4
    %v2435 = vsel %vm303, %v2427, %v2434
    %v2437 = vunpack.c.l.s4 1934713408
    %v2438 = vunpack.c.0.s8 %v2437
    %v2439 = vperm.slane %v2433, %v2438
    %v2441 = vunpack.c.l.s4 1934713408
    %v2442 = vunpack.c.0.s8 %v2441
    %v2443 = vperm.slane %v2435, %v2442
    %v2444 = vrot.slane %v2431, 4
    %v2445 = vsel %vm303, %v2444, %v2421
    %v2446 = vrot.slane %v2421, 4
    %v2447 = vsel %vm303, %v2431, %v2446
    %v2449 = vunpack.c.l.s4 1934713408
    %v2450 = vunpack.c.0.s8 %v2449
    %v2451 = vperm.slane %v2445, %v2450
    %v2453 = vunpack.c.l.s4 1934713408
    %v2454 = vunpack.c.0.s8 %v2453
    %v2455 = vperm.slane %v2447, %v2454
    %v2456 = vrot.slane %v2439, 4
    %v2457 = vsel %vm303, 0.0, %v2456
    %v2458 = vrot.slane %v2443, 4
    %v2459 = vsel %vm303, 0.0, %v2458
    %v2460 = vrot.slane %v2451, 4
    %v2461 = vsel %vm303, 0.0, %v2460
    %v2462 = vrot.slane %v2455, 4
    %v2463 = vsel %vm303, 0.0, %v2462
    %v2464 = vrot.slane %v1617, 4
    %v2465 = vsel %vm303, 0.0, %v2464
    %v2467 = vunpack.c.l.s4 1983009808
    %v2468 = vunpack.c.0.s8 %v2467
    %v2469 = vperm.slane %v1617, %v2468
    %v2471 = vunpack.c.l.s4 1983009808
    %v2472 = vunpack.c.0.s8 %v2471
    %v2473 = vperm.slane %v2465, %v2472
    %v2474 = vrot.slane %v1619, 4
    %v2475 = vsel %vm303, 0.0, %v2474
    %v2477 = vunpack.c.l.s4 1983009808
    %v2478 = vunpack.c.0.s8 %v2477
    %v2479 = vperm.slane %v1619, %v2478
    %v2481 = vunpack.c.l.s4 1983009808
    %v2482 = vunpack.c.0.s8 %v2481
    %v2483 = vperm.slane %v2475, %v2482
    %v2484 = vrot.slane %v2479, 4
    %v2485 = vsel %vm303, %v2484, %v2469
    %v2486 = vrot.slane %v2469, 4
    %v2487 = vsel %vm303, %v2479, %v2486
    %v2489 = vunpack.c.l.s4 1934713408
    %v2490 = vunpack.c.0.s8 %v2489
    %v2491 = vperm.slane %v2485, %v2490
    %v2493 = vunpack.c.l.s4 1934713408
    %v2494 = vunpack.c.0.s8 %v2493
    %v2495 = vperm.slane %v2487, %v2494
    %v2496 = vrot.slane %v2483, 4
    %v2497 = vsel %vm303, %v2496, %v2473
    %v2498 = vrot.slane %v2473, 4
    %v2499 = vsel %vm303, %v2483, %v2498
    %v2501 = vunpack.c.l.s4 1934713408
    %v2502 = vunpack.c.0.s8 %v2501
    %v2503 = vperm.slane %v2497, %v2502
    %v2505 = vunpack.c.l.s4 1934713408
    %v2506 = vunpack.c.0.s8 %v2505
    %v2507 = vperm.slane %v2499, %v2506
    %v2508 = vrot.slane %v2491, 4
    %v2509 = vsel %vm303, 0.0, %v2508
    %v2510 = vrot.slane %v2495, 4
    %v2511 = vsel %vm303, 0.0, %v2510
    %v2512 = vrot.slane %v2503, 4
    %v2513 = vsel %vm303, 0.0, %v2512
    %v2514 = vrot.slane %v2507, 4
    %v2515 = vsel %vm303, 0.0, %v2514
    %v2516 = vrot.slane %v1621, 4
    %v2517 = vsel %vm303, 0.0, %v2516
    %v2519 = vunpack.c.l.s4 1983009808
    %v2520 = vunpack.c.0.s8 %v2519
    %v2521 = vperm.slane %v1621, %v2520
    %v2523 = vunpack.c.l.s4 1983009808
    %v2524 = vunpack.c.0.s8 %v2523
    %v2525 = vperm.slane %v2517, %v2524
    %v2526 = vrot.slane %v1623, 4
    %v2527 = vsel %vm303, 0.0, %v2526
    %v2529 = vunpack.c.l.s4 1983009808
    %v2530 = vunpack.c.0.s8 %v2529
    %v2531 = vperm.slane %v1623, %v2530
    %v2533 = vunpack.c.l.s4 1983009808
    %v2534 = vunpack.c.0.s8 %v2533
    %v2535 = vperm.slane %v2527, %v2534
    %v2536 = vrot.slane %v2531, 4
    %v2537 = vsel %vm303, %v2536, %v2521
    %v2538 = vrot.slane %v2521, 4
    %v2539 = vsel %vm303, %v2531, %v2538
    %v2541 = vunpack.c.l.s4 1934713408
    %v2542 = vunpack.c.0.s8 %v2541
    %v2543 = vperm.slane %v2537, %v2542
    %v2545 = vunpack.c.l.s4 1934713408
    %v2546 = vunpack.c.0.s8 %v2545
    %v2547 = vperm.slane %v2539, %v2546
    %v2548 = vrot.slane %v2535, 4
    %v2549 = vsel %vm303, %v2548, %v2525
    %v2550 = vrot.slane %v2525, 4
    %v2551 = vsel %vm303, %v2535, %v2550
    %v2553 = vunpack.c.l.s4 1934713408
    %v2554 = vunpack.c.0.s8 %v2553
    %v2555 = vperm.slane %v2549, %v2554
    %v2557 = vunpack.c.l.s4 1934713408
    %v2558 = vunpack.c.0.s8 %v2557
    %v2559 = vperm.slane %v2551, %v2558
    %v2560 = vrot.slane %v2543, 4
    %v2561 = vsel %vm303, 0.0, %v2560
    %v2562 = vrot.slane %v2547, 4
    %v2563 = vsel %vm303, 0.0, %v2562
    %v2564 = vrot.slane %v2555, 4
    %v2565 = vsel %vm303, 0.0, %v2564
    %v2566 = vrot.slane %v2559, 4
    %v2567 = vsel %vm303, 0.0, %v2566
    %v2568 = vrot.slane %v1625, 4
    %v2569 = vsel %vm303, 0.0, %v2568
    %v2571 = vunpack.c.l.s4 1983009808
    %v2572 = vunpack.c.0.s8 %v2571
    %v2573 = vperm.slane %v1625, %v2572
    %v2575 = vunpack.c.l.s4 1983009808
    %v2576 = vunpack.c.0.s8 %v2575
    %v2577 = vperm.slane %v2569, %v2576
    %v2578 = vrot.slane %v1627, 4
    %v2579 = vsel %vm303, 0.0, %v2578
    %v2581 = vunpack.c.l.s4 1983009808
    %v2582 = vunpack.c.0.s8 %v2581
    %v2583 = vperm.slane %v1627, %v2582
    %v2585 = vunpack.c.l.s4 1983009808
    %v2586 = vunpack.c.0.s8 %v2585
    %v2587 = vperm.slane %v2579, %v2586
    %v2588 = vrot.slane %v2583, 4
    %v2589 = vsel %vm303, %v2588, %v2573
    %v2590 = vrot.slane %v2573, 4
    %v2591 = vsel %vm303, %v2583, %v2590
    %v2593 = vunpack.c.l.s4 1934713408
    %v2594 = vunpack.c.0.s8 %v2593
    %v2595 = vperm.slane %v2589, %v2594
    %v2597 = vunpack.c.l.s4 1934713408
    %v2598 = vunpack.c.0.s8 %v2597
    %v2599 = vperm.slane %v2591, %v2598
    %v2600 = vrot.slane %v2587, 4
    %v2601 = vsel %vm303, %v2600, %v2577
    %v2602 = vrot.slane %v2577, 4
    %v2603 = vsel %vm303, %v2587, %v2602
    %v2605 = vunpack.c.l.s4 1934713408
    %v2606 = vunpack.c.0.s8 %v2605
    %v2607 = vperm.slane %v2601, %v2606
    %v2609 = vunpack.c.l.s4 1934713408
    %v2610 = vunpack.c.0.s8 %v2609
    %v2611 = vperm.slane %v2603, %v2610
    %v2612 = vrot.slane %v2595, 4
    %v2613 = vsel %vm303, 0.0, %v2612
    %v2614 = vrot.slane %v2599, 4
    %v2615 = vsel %vm303, 0.0, %v2614
    %v2616 = vrot.slane %v2607, 4
    %v2617 = vsel %vm303, 0.0, %v2616
    %v2618 = vrot.slane %v2611, 4
    %v2619 = vsel %vm303, 0.0, %v2618
    %v2620 = vsel %vm719, %v2231, 0.0
    %v2621 = vsel %vm719, %v2439, 0.0
    %v2622 = vadd.f32 %v2620, %v2621
    %2623 = vadd.xlane.f32.xlu0 %v2622
    %v2624 = vpop.xlane.xlu0 %2623
    %v2625 = vsel %vm719, %v2249, 0.0
    %v2626 = vsel %vm719, %v2457, 0.0
    %v2627 = vadd.f32 %v2625, %v2626
    %2628 = vadd.xlane.f32.xlu0 %v2627
    %v2629 = vpop.xlane.xlu0 %2628
    %v2630 = vsel %vm719, %v2235, 0.0
    %v2631 = vsel %vm719, %v2443, 0.0
    %v2632 = vadd.f32 %v2630, %v2631
    %2633 = vadd.xlane.f32.xlu0 %v2632
    %v2634 = vpop.xlane.xlu0 %2633
    %v2635 = vsel %vm719, %v2251, 0.0
    %v2636 = vsel %vm719, %v2459, 0.0
    %v2637 = vadd.f32 %v2635, %v2636
    %2638 = vadd.xlane.f32.xlu0 %v2637
    %v2639 = vpop.xlane.xlu0 %2638
    %v2640 = vsel %vm719, %v2243, 0.0
    %v2641 = vsel %vm719, %v2451, 0.0
    %v2642 = vadd.f32 %v2640, %v2641
    %2643 = vadd.xlane.f32.xlu0 %v2642
    %v2644 = vpop.xlane.xlu0 %2643
    %v2645 = vsel %vm719, %v2253, 0.0
    %v2646 = vsel %vm719, %v2461, 0.0
    %v2647 = vadd.f32 %v2645, %v2646
    %2648 = vadd.xlane.f32.xlu0 %v2647
    %v2649 = vpop.xlane.xlu0 %2648
    %v2650 = vsel %vm719, %v2247, 0.0
    %v2651 = vsel %vm719, %v2455, 0.0
    %v2652 = vadd.f32 %v2650, %v2651
    %2653 = vadd.xlane.f32.xlu0 %v2652
    %v2654 = vpop.xlane.xlu0 %2653
    %v2655 = vsel %vm719, %v2255, 0.0
    %v2656 = vsel %vm719, %v2463, 0.0
    %v2657 = vadd.f32 %v2655, %v2656
    %2658 = vadd.xlane.f32.xlu0 %v2657
    %v2659 = vpop.xlane.xlu0 %2658
    %v2660 = vsel %vm719, %v2283, 0.0
    %v2661 = vsel %vm719, %v2491, 0.0
    %v2662 = vadd.f32 %v2660, %v2661
    %2663 = vadd.xlane.f32.xlu0 %v2662
    %v2664 = vpop.xlane.xlu0 %2663
    %v2665 = vsel %vm719, %v2301, 0.0
    %v2666 = vsel %vm719, %v2509, 0.0
    %v2667 = vadd.f32 %v2665, %v2666
    %2668 = vadd.xlane.f32.xlu0 %v2667
    %v2669 = vpop.xlane.xlu0 %2668
    %v2670 = vsel %vm719, %v2287, 0.0
    %v2671 = vsel %vm719, %v2495, 0.0
    %v2672 = vadd.f32 %v2670, %v2671
    %2673 = vadd.xlane.f32.xlu0 %v2672
    %v2674 = vpop.xlane.xlu0 %2673
    %v2675 = vsel %vm719, %v2303, 0.0
    %v2676 = vsel %vm719, %v2511, 0.0
    %v2677 = vadd.f32 %v2675, %v2676
    %2678 = vadd.xlane.f32.xlu0 %v2677
    %v2679 = vpop.xlane.xlu0 %2678
    %v2680 = vsel %vm719, %v2295, 0.0
    %v2681 = vsel %vm719, %v2503, 0.0
    %v2682 = vadd.f32 %v2680, %v2681
    %2683 = vadd.xlane.f32.xlu0 %v2682
    %v2684 = vpop.xlane.xlu0 %2683
    %v2685 = vsel %vm719, %v2305, 0.0
    %v2686 = vsel %vm719, %v2513, 0.0
    %v2687 = vadd.f32 %v2685, %v2686
    %2688 = vadd.xlane.f32.xlu0 %v2687
    %v2689 = vpop.xlane.xlu0 %2688
    %v2690 = vsel %vm719, %v2299, 0.0
    %v2691 = vsel %vm719, %v2507, 0.0
    %v2692 = vadd.f32 %v2690, %v2691
    %2693 = vadd.xlane.f32.xlu0 %v2692
    %v2694 = vpop.xlane.xlu0 %2693
    %v2695 = vsel %vm719, %v2307, 0.0
    %v2696 = vsel %vm719, %v2515, 0.0
    %v2697 = vadd.f32 %v2695, %v2696
    %2698 = vadd.xlane.f32.xlu0 %v2697
    %v2699 = vpop.xlane.xlu0 %2698
    %v2700 = vsel %vm719, %v2335, 0.0
    %v2701 = vsel %vm719, %v2543, 0.0
    %v2702 = vadd.f32 %v2700, %v2701
    %2703 = vadd.xlane.f32.xlu0 %v2702
    %v2704 = vpop.xlane.xlu0 %2703
    %v2705 = vsel %vm719, %v2353, 0.0
    %v2706 = vsel %vm719, %v2561, 0.0
    %v2707 = vadd.f32 %v2705, %v2706
    %2708 = vadd.xlane.f32.xlu0 %v2707
    %v2709 = vpop.xlane.xlu0 %2708
    %v2710 = vsel %vm719, %v2339, 0.0
    %v2711 = vsel %vm719, %v2547, 0.0
    %v2712 = vadd.f32 %v2710, %v2711
    %2713 = vadd.xlane.f32.xlu0 %v2712
    %v2714 = vpop.xlane.xlu0 %2713
    %v2715 = vsel %vm719, %v2355, 0.0
    %v2716 = vsel %vm719, %v2563, 0.0
    %v2717 = vadd.f32 %v2715, %v2716
    %2718 = vadd.xlane.f32.xlu0 %v2717
    %v2719 = vpop.xlane.xlu0 %2718
    %v2720 = vsel %vm719, %v2347, 0.0
    %v2721 = vsel %vm719, %v2555, 0.0
    %v2722 = vadd.f32 %v2720, %v2721
    %2723 = vadd.xlane.f32.xlu0 %v2722
    %v2724 = vpop.xlane.xlu0 %2723
    %v2725 = vsel %vm719, %v2357, 0.0
    %v2726 = vsel %vm719, %v2565, 0.0
    %v2727 = vadd.f32 %v2725, %v2726
    %2728 = vadd.xlane.f32.xlu0 %v2727
    %v2729 = vpop.xlane.xlu0 %2728
    %v2730 = vsel %vm719, %v2351, 0.0
    %v2731 = vsel %vm719, %v2559, 0.0
    %v2732 = vadd.f32 %v2730, %v2731
    %2733 = vadd.xlane.f32.xlu0 %v2732
    %v2734 = vpop.xlane.xlu0 %2733
    %v2735 = vsel %vm719, %v2359, 0.0
    %v2736 = vsel %vm719, %v2567, 0.0
    %v2737 = vadd.f32 %v2735, %v2736
    %2738 = vadd.xlane.f32.xlu0 %v2737
    %v2739 = vpop.xlane.xlu0 %2738
    %v2740 = vsel %vm719, %v2387, 0.0
    %v2741 = vsel %vm719, %v2595, 0.0
    %v2742 = vadd.f32 %v2740, %v2741
    %2743 = vadd.xlane.f32.xlu0 %v2742
    %v2744 = vpop.xlane.xlu0 %2743
    %v2745 = vsel %vm719, %v2405, 0.0
    %v2746 = vsel %vm719, %v2613, 0.0
    %v2747 = vadd.f32 %v2745, %v2746
    %2748 = vadd.xlane.f32.xlu0 %v2747
    %v2749 = vpop.xlane.xlu0 %2748
    %v2750 = vsel %vm719, %v2391, 0.0
    %v2751 = vsel %vm719, %v2599, 0.0
    %v2752 = vadd.f32 %v2750, %v2751
    %2753 = vadd.xlane.f32.xlu0 %v2752
    %v2754 = vpop.xlane.xlu0 %2753
    %v2755 = vsel %vm719, %v2407, 0.0
    %v2756 = vsel %vm719, %v2615, 0.0
    %v2757 = vadd.f32 %v2755, %v2756
    %2758 = vadd.xlane.f32.xlu0 %v2757
    %v2759 = vpop.xlane.xlu0 %2758
    %v2760 = vsel %vm719, %v2399, 0.0
    %v2761 = vsel %vm719, %v2607, 0.0
    %v2762 = vadd.f32 %v2760, %v2761
    %2763 = vadd.xlane.f32.xlu0 %v2762
    %v2764 = vpop.xlane.xlu0 %2763
    %v2765 = vsel %vm719, %v2409, 0.0
    %v2766 = vsel %vm719, %v2617, 0.0
    %v2767 = vadd.f32 %v2765, %v2766
    %2768 = vadd.xlane.f32.xlu0 %v2767
    %v2769 = vpop.xlane.xlu0 %2768
    %v2770 = vsel %vm719, %v2403, 0.0
    %v2771 = vsel %vm719, %v2611, 0.0
    %v2772 = vadd.f32 %v2770, %v2771
    %2773 = vadd.xlane.f32.xlu0 %v2772
    %v2774 = vpop.xlane.xlu0 %2773
    %v2775 = vsel %vm719, %v2411, 0.0
    %v2776 = vsel %vm719, %v2619, 0.0
    %v2777 = vadd.f32 %v2775, %v2776
    %2778 = vadd.xlane.f32.xlu0 %v2777
    %v2779 = vpop.xlane.xlu0 %2778
    %v2780 = vmul.f32 %v2048, %v2624
    %v2781 = vmul.f32 %v2053, %v2629
    %v2782 = vmul.f32 %v2058, %v2634
    %v2783 = vmul.f32 %v2063, %v2639
    %v2784 = vmul.f32 %v2068, %v2644
    %v2785 = vmul.f32 %v2073, %v2649
    %v2786 = vmul.f32 %v2078, %v2654
    %v2787 = vmul.f32 %v2083, %v2659
    %v2788 = vmul.f32 %v2088, %v2664
    %v2789 = vmul.f32 %v2093, %v2669
    %v2790 = vmul.f32 %v2098, %v2674
    %v2791 = vmul.f32 %v2103, %v2679
    %v2792 = vmul.f32 %v2108, %v2684
    %v2793 = vmul.f32 %v2113, %v2689
    %v2794 = vmul.f32 %v2118, %v2694
    %v2795 = vmul.f32 %v2123, %v2699
    %v2796 = vmul.f32 %v2128, %v2704
    %v2797 = vmul.f32 %v2133, %v2709
    %v2798 = vmul.f32 %v2138, %v2714
    %v2799 = vmul.f32 %v2143, %v2719
    %v2800 = vmul.f32 %v2148, %v2724
    %v2801 = vmul.f32 %v2153, %v2729
    %v2802 = vmul.f32 %v2158, %v2734
    %v2803 = vmul.f32 %v2163, %v2739
    %v2804 = vmul.f32 %v2168, %v2744
    %v2805 = vmul.f32 %v2173, %v2749
    %v2806 = vmul.f32 %v2178, %v2754
    %v2807 = vmul.f32 %v2183, %v2759
    %v2808 = vmul.f32 %v2188, %v2764
    %v2809 = vmul.f32 %v2193, %v2769
    %v2810 = vmul.f32 %v2198, %v2774
    %v2811 = vmul.f32 %v2203, %v2779
    %v2844 = vperm.slane %v2780, %v958
    %v2845 = vperm.slane %v2781, %v958
    %v2846 = vperm.slane %v2782, %v958
    %v2847 = vperm.slane %v2783, %v958
    %v2848 = vperm.slane %v2784, %v958
    %v2849 = vperm.slane %v2785, %v958
    %v2850 = vperm.slane %v2786, %v958
    %v2851 = vperm.slane %v2787, %v958
    %v2852 = vperm.slane %v2788, %v958
    %v2853 = vperm.slane %v2789, %v958
    %v2854 = vperm.slane %v2790, %v958
    %v2855 = vperm.slane %v2791, %v958
    %v2856 = vperm.slane %v2792, %v958
    %v2857 = vperm.slane %v2793, %v958
    %v2858 = vperm.slane %v2794, %v958
    %v2859 = vperm.slane %v2795, %v958
    %v2860 = vperm.slane %v2796, %v958
    %v2861 = vperm.slane %v2797, %v958
    %v2862 = vperm.slane %v2798, %v958
    %v2863 = vperm.slane %v2799, %v958
    %v2864 = vperm.slane %v2800, %v958
    %v2865 = vperm.slane %v2801, %v958
    %v2866 = vperm.slane %v2802, %v958
    %v2867 = vperm.slane %v2803, %v958
    %v2868 = vperm.slane %v2804, %v958
    %v2869 = vperm.slane %v2805, %v958
    %v2870 = vperm.slane %v2806, %v958
    %v2871 = vperm.slane %v2807, %v958
    %v2872 = vperm.slane %v2808, %v958
    %v2873 = vperm.slane %v2809, %v958
    %v2874 = vperm.slane %v2810, %v958
    %v2875 = vperm.slane %v2811, %v958
    %v2876 = vsel %vm991, %v2845, %v2844
    %v2877 = vsel %vm993, %v2846, %v2876
    %v2878 = vsel %vm995, %v2847, %v2877
    %v2879 = vsel %vm997, %v2848, %v2878
    %v2880 = vsel %vm999, %v2849, %v2879
    %v2881 = vsel %vm1001, %v2850, %v2880
    %v2882 = vsel %vm1003, %v2851, %v2881
    %v2883 = vsel %vm991, %v2853, %v2852
    %v2884 = vsel %vm993, %v2854, %v2883
    %v2885 = vsel %vm995, %v2855, %v2884
    %v2886 = vsel %vm997, %v2856, %v2885
    %v2887 = vsel %vm999, %v2857, %v2886
    %v2888 = vsel %vm1001, %v2858, %v2887
    %v2889 = vsel %vm1003, %v2859, %v2888
    %v2890 = vsel %vm991, %v2861, %v2860
    %v2891 = vsel %vm993, %v2862, %v2890
    %v2892 = vsel %vm995, %v2863, %v2891
    %v2893 = vsel %vm997, %v2864, %v2892
    %v2894 = vsel %vm999, %v2865, %v2893
    %v2895 = vsel %vm1001, %v2866, %v2894
    %v2896 = vsel %vm1003, %v2867, %v2895
    %v2897 = vsel %vm991, %v2869, %v2868
    %v2898 = vsel %vm993, %v2870, %v2897
    %v2899 = vsel %vm995, %v2871, %v2898
    %v2900 = vsel %vm997, %v2872, %v2899
    %v2901 = vsel %vm999, %v2873, %v2900
    %v2902 = vsel %vm1001, %v2874, %v2901
    %v2903 = vsel %vm1003, %v2875, %v2902
    %2908 = vxpose.xlu0.b32.start [1/16] %v2882, 128
    %2909 = vxpose.xlu0.b32.cont [2/16] %v2889, 128
    %2910 = vxpose.xlu0.b32.cont [3/16] %v2896, 128
    %2911 = vxpose.xlu0.b32.cont [4/16] %v2903, 128
    %2912 = vxpose.xlu0.b32.cont [5/16] 0.0, 128
    %2913 = vxpose.xlu0.b32.cont [6/16] 0.0, 128
    %2914 = vxpose.xlu0.b32.cont [7/16] 0.0, 128
    %2915 = vxpose.xlu0.b32.cont [8/16] 0.0, 128
    %2916 = vxpose.xlu0.b32.cont [9/16] 0.0, 128
    %2917 = vxpose.xlu0.b32.cont [10/16] 0.0, 128
    %2918 = vxpose.xlu0.b32.cont [11/16] 0.0, 128
    %2919 = vxpose.xlu0.b32.cont [12/16] 0.0, 128
    %2920 = vxpose.xlu0.b32.cont [13/16] 0.0, 128
    %2921 = vxpose.xlu0.b32.cont [14/16] 0.0, 128
    %2922 = vxpose.xlu0.b32.cont [15/16] 0.0, 128
    %2923 = vxpose.xlu0.b32.end [16/16] 0.0, 128
    %v2924 = vpop.trf.xlu0
    %v2925 = vpop.trf.xlu0
    %v2926 = vpop.trf.xlu0
    %v2927 = vpop.trf.xlu0
    %v2928 = vpop.trf.xlu0
    %v2929 = vpop.trf.xlu0
    %v2930 = vpop.trf.xlu0
    %v2931 = vpop.trf.xlu0
    %v2932 = vpop.trf.xlu0
    %v2933 = vpop.trf.xlu0
    %v2934 = vpop.trf.xlu0
    %v2935 = vpop.trf.xlu0
    %v2936 = vpop.trf.xlu0
    %v2937 = vpop.trf.xlu0
    %v2938 = vpop.trf.xlu0
    %v2939 = vpop.trf.xlu0
    %v2941 = vsel %vm1062, %v2924, 0
    %2943 = vmatpush.msra.mxu0 0.0
    %2944 = vmatpush.msra.mxu0 0.0
    %2945 = vmatpush.msra.mxu0 0.0
    %2946 = vmatpush.msra.mxu0 0.0
    %2947 = vmatpush.msra.mxu0 0.0
    %2948 = vmatpush.msra.mxu0 0.0
    %2949 = vmatpush.msra.mxu0 0.0
    %2950 = vmatpush.msra.mxu0 0.0
    %2951 = vmatpush.msra.mxu0 0.0
    %2952 = vmatpush.msra.mxu0 0.0
    %2953 = vmatpush.msra.mxu0 0.0
    %2954 = vmatpush.msra.mxu0 0.0
    %2955 = vmatpush.msra.mxu0 1.0
    %2956 = vmatpush.msra.mxu0 1.0
    %2957 = vmatpush.msra.mxu0 1.0
    %2958 = vmatpush.msra.mxu0 1.0
    %2959 = vmatmul.f32.gmra.mxu0 %v2941
    %v2960 = vpop.f32.mrf.mxu0
    %v2961 = vadd.f32 0.0, %v2960
    %2962 = vdwg.mxu0
    %v2963 = vmul.f32 %v2961, 0.048828125
    %2965 = vrot.lane.b32.xlu0 %v2963, 8
    %v2966 = vpop.permute.xlu0 %2965
    %vm2968 = vcmask 66624
    %2969 = vst.msk [vmem:[#allocation2] sm:$0x3] %vm2968, %v2966
    // Predicated region
    $region18: #{tpu_custom_call.1} parent=1 // pred_check
      _
    $region19: #{tpu_custom_call.1} parent=1 // pred_check_branch
      %2971 = sbr.rel (0) target = $region21
    $region20: #{tpu_custom_call.1} parent=1 // pred_region
      %2973 = vsyncadd [#allocation3], 0
      %s2975 = sshll.u32 [#allocation2], 4
      %s2976 = int_to_ptr.vmem [resolvable:$true] %s2975
      %s2977 = sshll.u32 %s4, 4
      %s2978 = int_to_ptr.hbm [resolvable:$true] %s2977
      %2980 = dma.vmem_to_hbm [thread:$0]  %s2976, 32, %s2978, [#allocation3]
    $region21: #{tpu_custom_call.1} parent=1 // pred_fallthru
      _
    // Predicated region
    $region22: #{tpu_custom_call.1} parent=1 // pred_check
      _
    $region23: #{tpu_custom_call.1} parent=1 // pred_check_branch
      %2982 = sbr.rel (0) target = $region25
    $region24: #{tpu_custom_call.1} parent=1 // pred_region
      %2984 = dma.done [#allocation3], 32
    $region25: #{tpu_custom_call.1} parent=1 // pred_fallthru
      _
    %2985 = vsyncpa [#allocation3], 1

</llo_original>
